<compile_context>
chip_gen: v5e
topology: v5e:2x2
jax: 0.10.0
libtpu: 0.0.40
codegen_flags: <defaults>
</compile_context>

<pallas_src>
import jax
import jax.numpy as jnp
from jax import lax
from jax.experimental import pallas as pl
from jax.experimental.pallas import tpu as pltpu


LANES = 128          # all GEMM output-channel dims are zero-padded to a full vreg width
DEF_TILE_M = 512     # rows per grid step (~85% of HBM roofline per measured table)
SUBLANE_PACK = 16    # bf16 sublane packing granularity


def _round_up(x, m):
    return (x + m - 1) // m * m


def _compiler_params():
    return pltpu.CompilerParams(
        dimension_semantics=("parallel",),          # shard M tiles across TCs
        vmem_limit_bytes=32 * 1024 * 1024,
    )


def _pad_rows(x, m_pad):
    m = x.shape[0]
    if m_pad == m:
        return x
    return jnp.pad(x, ((0, m_pad - m),) + ((0, 0),) * (x.ndim - 1))


# ---------------------------------------------------------------------------
# Pallas kernels
# ---------------------------------------------------------------------------
def _conv_pool_kernel(p0_ref, p1_ref, p2_ref, p3_ref, w_ref, b_ref, o_ref):
    """Fused conv-GEMM + 2x2 max-pool + bias + ReLU.

    pX_ref: (TM, K) bf16 im2col patches for one of the 4 pooling phases.
    w_ref : (K, 128) bf16 (output channels zero-padded to 128 lanes, resident).
    b_ref : (1, 128) f32 bias (resident).
    o_ref : (TM, 128) bf16 pooled activations.
    max/ReLU commute and the bias is phase-invariant, so pool before epilogue.
    """
    w = w_ref[...]
    acc = jnp.dot(p0_ref[...], w, preferred_element_type=jnp.float32)
    acc = jnp.maximum(acc, jnp.dot(p1_ref[...], w, preferred_element_type=jnp.float32))
    acc = jnp.maximum(acc, jnp.dot(p2_ref[...], w, preferred_element_type=jnp.float32))
    acc = jnp.maximum(acc, jnp.dot(p3_ref[...], w, preferred_element_type=jnp.float32))
    o_ref[...] = jnp.maximum(acc + b_ref[...], 0.0).astype(o_ref.dtype)


def _matmul_bias_kernel(x_ref, w_ref, b_ref, o_ref):
    """o = x @ w + b (bf16 MXU inputs, f32 accumulation and epilogue)."""
    acc = jnp.dot(x_ref[...], w_ref[...], preferred_element_type=jnp.float32)
    o_ref[...] = (acc + b_ref[...]).astype(o_ref.dtype)


# ---------------------------------------------------------------------------
# Wrappers
# ---------------------------------------------------------------------------
def conv_relu_pool(x_nhwc, w_oihw, b, *, tile_m=DEF_TILE_M):
    """Fused valid KHxKW conv + bias + ReLU + 2x2/2 max-pool.

    Returns (B, OH//2, OW//2, 128) bf16 with channels [Cout:] zero.
    """
    B, H, W, Cin = x_nhwc.shape
    Cout, Cin_w, KH, KW = w_oihw.shape
    assert Cin_w == Cin
    OH, OW = H - KH + 1, W - KW + 1
    PH, PW = OH // 2, OW // 2
    K = Cin * KH * KW
    M = B * PH * PW

    xb = x_nhwc.astype(jnp.bfloat16)

    # One stride-2 im2col patch matrix per pooling phase (dh, dw).  Feature
    # ordering of conv_general_dilated_patches is (cin, kh, kw) -- matches
    # PyTorch's weight.reshape(Cout, Cin*KH*KW).
    phases = []
    for dh in (0, 1):
        for dw in (0, 1):
            p = lax.conv_general_dilated_patches(
                xb[:, dh:, dw:, :], (KH, KW), (2, 2), "VALID",
                dimension_numbers=("NHWC", "HWIO", "NHWC"))
            phases.append(p.reshape(M, K))

    tm = tile_m if M >= tile_m else _round_up(M, SUBLANE_PACK)
    m_pad = _round_up(M, tm)
    phases = [_pad_rows(p, m_pad) for p in phases]

    # Weight (Cout, Cin, KH, KW) -> (K, 128) bf16, lane-padded output channels.
    wf = w_oihw.reshape(Cout, K).T.astype(jnp.bfloat16)
    wf = jnp.pad(wf, ((0, 0), (0, LANES - Cout)))
    bf = jnp.pad(b.astype(jnp.float32), (0, LANES - Cout)).reshape(1, LANES)

    out = pl.pallas_call(
        _conv_pool_kernel,
        out_shape=jax.ShapeDtypeStruct((m_pad, LANES), jnp.bfloat16),
        grid=(m_pad // tm,),
        in_specs=[pl.BlockSpec((tm, K), lambda i: (i, 0))] * 4
        + [
            pl.BlockSpec((K, LANES), lambda i: (0, 0)),   # resident weight
            pl.BlockSpec((1, LANES), lambda i: (0, 0)),   # resident bias
        ],
        out_specs=pl.BlockSpec((tm, LANES), lambda i: (i, 0)),
        compiler_params=_compiler_params(),
    )(*phases, wf, bf)

    return out[:M].reshape(B, PH, PW, LANES)


def linear(x, w_out_in, b, *, tile_m=DEF_TILE_M):
    """y = x @ w.T + b with output features lane-padded to 128 then sliced."""
    M, K = x.shape
    N = w_out_in.shape[0]
    tm = tile_m if M >= tile_m else _round_up(M, SUBLANE_PACK)
    m_pad = _round_up(M, tm)

    xb = _pad_rows(x.astype(jnp.bfloat16), m_pad)
    wf = jnp.pad(w_out_in.T.astype(jnp.bfloat16), ((0, 0), (0, LANES - N)))
    bf = jnp.pad(b.astype(jnp.float32), (0, LANES - N)).reshape(1, LANES)

    out = pl.pallas_call(
        _matmul_bias_kernel,
        out_shape=jax.ShapeDtypeStruct((m_pad, LANES), jnp.float32),
        grid=(m_pad // tm,),
        in_specs=[
            pl.BlockSpec((tm, K), lambda i: (i, 0)),
            pl.BlockSpec((K, LANES), lambda i: (0, 0)),   # resident weight
            pl.BlockSpec((1, LANES), lambda i: (0, 0)),   # resident bias
        ],
        out_specs=pl.BlockSpec((tm, LANES), lambda i: (i, 0)),
        compiler_params=_compiler_params(),
    )(xb, wf, bf)
    return out[:M, :N]


# ---------------------------------------------------------------------------
# Full forward pass (matches NeuralNetwork.forward)
# ---------------------------------------------------------------------------
def forward(x_nchw, params):
    w1, b1, w2, b2, wfc, bfc = params
    B = x_nchw.shape[0]

    x = jnp.transpose(x_nchw, (0, 2, 3, 1))              # NCHW -> NHWC (B,28,28,1)
    x = conv_relu_pool(x, w1, b1)                        # (B,12,12,128), ch 0..5 valid
    x = conv_relu_pool(x[..., : w2.shape[1]], w2, b2)    # (B,4,4,128),  ch 0..11 valid

    # PyTorch flattens NCHW (c, h, w); our rows are NHWC (h, w, c).  Fold the
    # permutation into the FC weight (trace-time, tiny) instead of transposing
    # activations at runtime.
    Cout = w2.shape[0]                                   # 12
    feats = x[..., :Cout].reshape(B, 4 * 4 * Cout)       # order (h, w, c)
    wfc_hwc = wfc.reshape(10, Cout, 4, 4).transpose(0, 2, 3, 1).reshape(10, 4 * 4 * Cout)
    return linear(feats, wfc_hwc, bfc)                   # (B, 10) f32


# ---------------------------------------------------------------------------
# Params + pure-JAX reference (for a correctness check in __main__)
# ---------------------------------------------------------------------------
def init_params(key):
    ks = jax.random.split(key, 6)
    w1 = 0.1 * jax.random.normal(ks[0], (6, 1, 5, 5), jnp.float32)
    b1 = 0.1 * jax.random.normal(ks[1], (6,), jnp.float32)
    w2 = 0.1 * jax.random.normal(ks[2], (12, 6, 5, 5), jnp.float32)
    b2 = 0.1 * jax.random.normal(ks[3], (12,), jnp.float32)
    wfc = 0.1 * jax.random.normal(ks[4], (10, 12 * 4 * 4), jnp.float32)
    bfc = 0.1 * jax.random.normal(ks[5], (10,), jnp.float32)
    return (w1, b1, w2, b2, wfc, bfc)


def reference_forward(x_nchw, params):
    w1, b1, w2, b2, wfc, bfc = params
    dn = ("NCHW", "OIHW", "NCHW")

    def pool(y):
        B, C, H, W = y.shape
        return y.reshape(B, C, H // 2, 2, W // 2, 2).max(axis=(3, 5))

    y = lax.conv_general_dilated(x_nchw, w1, (1, 1), "VALID", dimension_numbers=dn)
    y = pool(jnp.maximum(y + b1[None, :, None, None], 0.0))
    y = lax.conv_general_dilated(y, w2, (1, 1), "VALID", dimension_numbers=dn)
    y = pool(jnp.maximum(y + b2[None, :, None, None], 0.0))
    y = y.reshape(y.shape[0], -1)
    return y @ wfc.T + bfc


if __name__ == "__main__":
    key = jax.random.PRNGKey(0)
    k_x, k_p = jax.random.split(key)
    # Input must be 28x28 so that 12*4*4 features reach the FC layer.
    x = jax.random.normal(k_x, (2, 1, 28, 28), jnp.float32)
    params = init_params(k_p)

    out = jax.jit(forward)(x, params)
    out = jax.block_until_ready(out)
    assert out.shape == (2, 10) and out.dtype == jnp.float32

    # Sanity check vs. f32 pure-JAX reference (tolerance covers bf16 MXU inputs).
    ref = reference_forward(x, params)
    err = float(jnp.max(jnp.abs(out - ref)))
    assert err < 1.2e-1, f"mismatch vs reference: max abs err {err}"

    print("KERNEL_OK")
</pallas_src>

<mosaic_0001>
module attributes {stable_mosaic.version = 11 : i64} {
  func.func @_conv_pool_kernel(%arg0: i32, %arg1: memref<288x25xbf16, #tpu.memory_space<vmem>>, %arg2: memref<288x25xbf16, #tpu.memory_space<vmem>>, %arg3: memref<288x25xbf16, #tpu.memory_space<vmem>>, %arg4: memref<288x25xbf16, #tpu.memory_space<vmem>>, %arg5: memref<25x128xbf16, #tpu.memory_space<vmem>>, %arg6: memref<1x128xf32, #tpu.memory_space<vmem>>, %arg7: memref<288x128xbf16, #tpu.memory_space<vmem>>) attributes {dimension_semantics = [#tpu.dimension_semantics<parallel>], iteration_bounds = array<i64: 1>, scalar_prefetch = 0 : i64, scratch_operands = 0 : i64, tpu.core_type = #tpu.core_type<tc>, window_params = [{transform_indices = @transform_0, window_bounds = array<i64: 288, 25>}, {transform_indices = @transform_1, window_bounds = array<i64: 288, 25>}, {transform_indices = @transform_2, window_bounds = array<i64: 288, 25>}, {transform_indices = @transform_3, window_bounds = array<i64: 288, 25>}, {pipeline_mode = #tpu.pipeline_mode<synchronous>, transform_indices = @transform_4, window_bounds = array<i64: 25, 128>}, {pipeline_mode = #tpu.pipeline_mode<synchronous>, transform_indices = @transform_5, window_bounds = array<i64: 1, 128>}, {transform_indices = @transform_6, window_bounds = array<i64: 288, 128>}]} {
    %c0 = arith.constant 0 : index
    %c0_0 = arith.constant 0 : index
    %0 = vector.load %arg5[%c0, %c0_0] : memref<25x128xbf16, #tpu.memory_space<vmem>>, vector<25x128xbf16>
    %c0_1 = arith.constant 0 : index
    %c0_2 = arith.constant 0 : index
    %1 = vector.load %arg1[%c0_1, %c0_2] : memref<288x25xbf16, #tpu.memory_space<vmem>>, vector<288x25xbf16>
    %cst = arith.constant dense<0.000000e+00> : vector<288x128xf32>
    %2 = tpu.matmul %1, %0, %cst {dimension_numbers = #tpu.dot_dimension_numbers<[1], [0], [0], [1], [0, 0, 1, 1], [], []>} : vector<288x25xbf16>, vector<25x128xbf16>, vector<288x128xf32> -> vector<288x128xf32>
    %c0_3 = arith.constant 0 : index
    %c0_4 = arith.constant 0 : index
    %3 = vector.load %arg2[%c0_3, %c0_4] : memref<288x25xbf16, #tpu.memory_space<vmem>>, vector<288x25xbf16>
    %cst_5 = arith.constant dense<0.000000e+00> : vector<288x128xf32>
    %4 = tpu.matmul %3, %0, %cst_5 {dimension_numbers = #tpu.dot_dimension_numbers<[1], [0], [0], [1], [0, 0, 1, 1], [], []>} : vector<288x25xbf16>, vector<25x128xbf16>, vector<288x128xf32> -> vector<288x128xf32>
    %5 = arith.maximumf %2, %4 : vector<288x128xf32>
    %c0_6 = arith.constant 0 : index
    %c0_7 = arith.constant 0 : index
    %6 = vector.load %arg3[%c0_6, %c0_7] : memref<288x25xbf16, #tpu.memory_space<vmem>>, vector<288x25xbf16>
    %cst_8 = arith.constant dense<0.000000e+00> : vector<288x128xf32>
    %7 = tpu.matmul %6, %0, %cst_8 {dimension_numbers = #tpu.dot_dimension_numbers<[1], [0], [0], [1], [0, 0, 1, 1], [], []>} : vector<288x25xbf16>, vector<25x128xbf16>, vector<288x128xf32> -> vector<288x128xf32>
    %8 = arith.maximumf %5, %7 : vector<288x128xf32>
    %c0_9 = arith.constant 0 : index
    %c0_10 = arith.constant 0 : index
    %9 = vector.load %arg4[%c0_9, %c0_10] : memref<288x25xbf16, #tpu.memory_space<vmem>>, vector<288x25xbf16>
    %cst_11 = arith.constant dense<0.000000e+00> : vector<288x128xf32>
    %10 = tpu.matmul %9, %0, %cst_11 {dimension_numbers = #tpu.dot_dimension_numbers<[1], [0], [0], [1], [0, 0, 1, 1], [], []>} : vector<288x25xbf16>, vector<25x128xbf16>, vector<288x128xf32> -> vector<288x128xf32>
    %11 = arith.maximumf %8, %10 : vector<288x128xf32>
    %c0_12 = arith.constant 0 : index
    %c0_13 = arith.constant 0 : index
    %12 = vector.load %arg6[%c0_12, %c0_13] : memref<1x128xf32, #tpu.memory_space<vmem>>, vector<1x128xf32>
    %13 = vector.broadcast %12 : vector<1x128xf32> to vector<288x128xf32>
    %14 = arith.addf %11, %13 : vector<288x128xf32>
    %cst_14 = arith.constant 0.000000e+00 : f32
    %15 = vector.broadcast %cst_14 : f32 to vector<288x128xf32>
    %16 = arith.maximumf %14, %15 : vector<288x128xf32>
    %17 = arith.truncf %16 : vector<288x128xf32> to vector<288x128xbf16>
    %c0_15 = arith.constant 0 : index
    %c0_16 = arith.constant 0 : index
    %18 = vector.load %arg7[%c0_15, %c0_16] : memref<288x128xbf16, #tpu.memory_space<vmem>>, vector<288x128xbf16>
    tpu.vector_store %arg7[%c0_15, %c0_16], %17 {strides = array<i32>} : memref<288x128xbf16, #tpu.memory_space<vmem>>, vector<288x128xbf16>,
    return
  }
  func.func @transform_0(%arg0: i32) -> (i32, i32) {
    %c0_i32 = arith.constant 0 : i32
    %c0_i32_0 = arith.constant 0 : i32
    return %arg0, %c0_i32 : i32, i32
  }
  func.func @transform_1(%arg0: i32) -> (i32, i32) {
    %c0_i32 = arith.constant 0 : i32
    %c0_i32_0 = arith.constant 0 : i32
    return %arg0, %c0_i32 : i32, i32
  }
  func.func @transform_2(%arg0: i32) -> (i32, i32) {
    %c0_i32 = arith.constant 0 : i32
    %c0_i32_0 = arith.constant 0 : i32
    return %arg0, %c0_i32 : i32, i32
  }
  func.func @transform_3(%arg0: i32) -> (i32, i32) {
    %c0_i32 = arith.constant 0 : i32
    %c0_i32_0 = arith.constant 0 : i32
    return %arg0, %c0_i32 : i32, i32
  }
  func.func @transform_4(%arg0: i32) -> (i32, i32) {
    %c0_i32 = arith.constant 0 : i32
    %c0_i32_0 = arith.constant 0 : i32
    %c0_i32_1 = arith.constant 0 : i32
    return %c0_i32, %c0_i32_0 : i32, i32
  }
  func.func @transform_5(%arg0: i32) -> (i32, i32) {
    %c0_i32 = arith.constant 0 : i32
    %c0_i32_0 = arith.constant 0 : i32
    %c0_i32_1 = arith.constant 0 : i32
    return %c0_i32, %c0_i32_0 : i32, i32
  }
  func.func @transform_6(%arg0: i32) -> (i32, i32) {
    %c0_i32 = arith.constant 0 : i32
    %c0_i32_0 = arith.constant 0 : i32
    return %arg0, %c0_i32 : i32, i32
  }
}

module attributes {stable_mosaic.version = 11 : i64} {
  func.func @_conv_pool_kernel(%arg0: i32, %arg1: memref<32x150xbf16, #tpu.memory_space<vmem>>, %arg2: memref<32x150xbf16, #tpu.memory_space<vmem>>, %arg3: memref<32x150xbf16, #tpu.memory_space<vmem>>, %arg4: memref<32x150xbf16, #tpu.memory_space<vmem>>, %arg5: memref<150x128xbf16, #tpu.memory_space<vmem>>, %arg6: memref<1x128xf32, #tpu.memory_space<vmem>>, %arg7: memref<32x128xbf16, #tpu.memory_space<vmem>>) attributes {dimension_semantics = [#tpu.dimension_semantics<parallel>], iteration_bounds = array<i64: 1>, scalar_prefetch = 0 : i64, scratch_operands = 0 : i64, tpu.core_type = #tpu.core_type<tc>, window_params = [{transform_indices = @transform_0, window_bounds = array<i64: 32, 150>}, {transform_indices = @transform_1, window_bounds = array<i64: 32, 150>}, {transform_indices = @transform_2, window_bounds = array<i64: 32, 150>}, {transform_indices = @transform_3, window_bounds = array<i64: 32, 150>}, {pipeline_mode = #tpu.pipeline_mode<synchronous>, transform_indices = @transform_4, window_bounds = array<i64: 150, 128>}, {pipeline_mode = #tpu.pipeline_mode<synchronous>, transform_indices = @transform_5, window_bounds = array<i64: 1, 128>}, {transform_indices = @transform_6, window_bounds = array<i64: 32, 128>}]} {
    %c0 = arith.constant 0 : index
    %c0_0 = arith.constant 0 : index
    %0 = vector.load %arg5[%c0, %c0_0] : memref<150x128xbf16, #tpu.memory_space<vmem>>, vector<150x128xbf16>
    %c0_1 = arith.constant 0 : index
    %c0_2 = arith.constant 0 : index
    %1 = vector.load %arg1[%c0_1, %c0_2] : memref<32x150xbf16, #tpu.memory_space<vmem>>, vector<32x150xbf16>
    %cst = arith.constant dense<0.000000e+00> : vector<32x128xf32>
    %2 = tpu.matmul %1, %0, %cst {dimension_numbers = #tpu.dot_dimension_numbers<[1], [0], [0], [1], [0, 0, 1, 1], [], []>} : vector<32x150xbf16>, vector<150x128xbf16>, vector<32x128xf32> -> vector<32x128xf32>
    %c0_3 = arith.constant 0 : index
    %c0_4 = arith.constant 0 : index
    %3 = vector.load %arg2[%c0_3, %c0_4] : memref<32x150xbf16, #tpu.memory_space<vmem>>, vector<32x150xbf16>
    %cst_5 = arith.constant dense<0.000000e+00> : vector<32x128xf32>
    %4 = tpu.matmul %3, %0, %cst_5 {dimension_numbers = #tpu.dot_dimension_numbers<[1], [0], [0], [1], [0, 0, 1, 1], [], []>} : vector<32x150xbf16>, vector<150x128xbf16>, vector<32x128xf32> -> vector<32x128xf32>
    %5 = arith.maximumf %2, %4 : vector<32x128xf32>
    %c0_6 = arith.constant 0 : index
    %c0_7 = arith.constant 0 : index
    %6 = vector.load %arg3[%c0_6, %c0_7] : memref<32x150xbf16, #tpu.memory_space<vmem>>, vector<32x150xbf16>
    %cst_8 = arith.constant dense<0.000000e+00> : vector<32x128xf32>
    %7 = tpu.matmul %6, %0, %cst_8 {dimension_numbers = #tpu.dot_dimension_numbers<[1], [0], [0], [1], [0, 0, 1, 1], [], []>} : vector<32x150xbf16>, vector<150x128xbf16>, vector<32x128xf32> -> vector<32x128xf32>
    %8 = arith.maximumf %5, %7 : vector<32x128xf32>
    %c0_9 = arith.constant 0 : index
    %c0_10 = arith.constant 0 : index
    %9 = vector.load %arg4[%c0_9, %c0_10] : memref<32x150xbf16, #tpu.memory_space<vmem>>, vector<32x150xbf16>
    %cst_11 = arith.constant dense<0.000000e+00> : vector<32x128xf32>
    %10 = tpu.matmul %9, %0, %cst_11 {dimension_numbers = #tpu.dot_dimension_numbers<[1], [0], [0], [1], [0, 0, 1, 1], [], []>} : vector<32x150xbf16>, vector<150x128xbf16>, vector<32x128xf32> -> vector<32x128xf32>
    %11 = arith.maximumf %8, %10 : vector<32x128xf32>
    %c0_12 = arith.constant 0 : index
    %c0_13 = arith.constant 0 : index
    %12 = vector.load %arg6[%c0_12, %c0_13] : memref<1x128xf32, #tpu.memory_space<vmem>>, vector<1x128xf32>
    %13 = vector.broadcast %12 : vector<1x128xf32> to vector<32x128xf32>
    %14 = arith.addf %11, %13 : vector<32x128xf32>
    %cst_14 = arith.constant 0.000000e+00 : f32
    %15 = vector.broadcast %cst_14 : f32 to vector<32x128xf32>
    %16 = arith.maximumf %14, %15 : vector<32x128xf32>
    %17 = arith.truncf %16 : vector<32x128xf32> to vector<32x128xbf16>
    %c0_15 = arith.constant 0 : index
    %c0_16 = arith.constant 0 : index
    %18 = vector.load %arg7[%c0_15, %c0_16] : memref<32x128xbf16, #tpu.memory_space<vmem>>, vector<32x128xbf16>
    tpu.vector_store %arg7[%c0_15, %c0_16], %17 {strides = array<i32>} : memref<32x128xbf16, #tpu.memory_space<vmem>>, vector<32x128xbf16>,
    return
  }
  func.func @transform_0(%arg0: i32) -> (i32, i32) {
    %c0_i32 = arith.constant 0 : i32
    %c0_i32_0 = arith.constant 0 : i32
    return %arg0, %c0_i32 : i32, i32
  }
  func.func @transform_1(%arg0: i32) -> (i32, i32) {
    %c0_i32 = arith.constant 0 : i32
    %c0_i32_0 = arith.constant 0 : i32
    return %arg0, %c0_i32 : i32, i32
  }
  func.func @transform_2(%arg0: i32) -> (i32, i32) {
    %c0_i32 = arith.constant 0 : i32
    %c0_i32_0 = arith.constant 0 : i32
    return %arg0, %c0_i32 : i32, i32
  }
  func.func @transform_3(%arg0: i32) -> (i32, i32) {
    %c0_i32 = arith.constant 0 : i32
    %c0_i32_0 = arith.constant 0 : i32
    return %arg0, %c0_i32 : i32, i32
  }
  func.func @transform_4(%arg0: i32) -> (i32, i32) {
    %c0_i32 = arith.constant 0 : i32
    %c0_i32_0 = arith.constant 0 : i32
    %c0_i32_1 = arith.constant 0 : i32
    return %c0_i32, %c0_i32_0 : i32, i32
  }
  func.func @transform_5(%arg0: i32) -> (i32, i32) {
    %c0_i32 = arith.constant 0 : i32
    %c0_i32_0 = arith.constant 0 : i32
    %c0_i32_1 = arith.constant 0 : i32
    return %c0_i32, %c0_i32_0 : i32, i32
  }
  func.func @transform_6(%arg0: i32) -> (i32, i32) {
    %c0_i32 = arith.constant 0 : i32
    %c0_i32_0 = arith.constant 0 : i32
    return %arg0, %c0_i32 : i32, i32
  }
}

module attributes {stable_mosaic.version = 11 : i64} {
  func.func @_matmul_bias_kernel(%arg0: i32, %arg1: memref<16x192xbf16, #tpu.memory_space<vmem>>, %arg2: memref<192x128xbf16, #tpu.memory_space<vmem>>, %arg3: memref<1x128xf32, #tpu.memory_space<vmem>>, %arg4: memref<16x128xf32, #tpu.memory_space<vmem>>) attributes {dimension_semantics = [#tpu.dimension_semantics<parallel>], iteration_bounds = array<i64: 1>, scalar_prefetch = 0 : i64, scratch_operands = 0 : i64, tpu.core_type = #tpu.core_type<tc>, window_params = [{transform_indices = @transform_0, window_bounds = array<i64: 16, 192>}, {pipeline_mode = #tpu.pipeline_mode<synchronous>, transform_indices = @transform_1, window_bounds = array<i64: 192, 128>}, {pipeline_mode = #tpu.pipeline_mode<synchronous>, transform_indices = @transform_2, window_bounds = array<i64: 1, 128>}, {transform_indices = @transform_3, window_bounds = array<i64: 16, 128>}]} {
    %c0 = arith.constant 0 : index
    %c0_0 = arith.constant 0 : index
    %0 = vector.load %arg1[%c0, %c0_0] : memref<16x192xbf16, #tpu.memory_space<vmem>>, vector<16x192xbf16>
    %c0_1 = arith.constant 0 : index
    %c0_2 = arith.constant 0 : index
    %1 = vector.load %arg2[%c0_1, %c0_2] : memref<192x128xbf16, #tpu.memory_space<vmem>>, vector<192x128xbf16>
    %cst = arith.constant dense<0.000000e+00> : vector<16x128xf32>
    %2 = tpu.matmul %0, %1, %cst {dimension_numbers = #tpu.dot_dimension_numbers<[1], [0], [0], [1], [0, 0, 1, 1], [], []>} : vector<16x192xbf16>, vector<192x128xbf16>, vector<16x128xf32> -> vector<16x128xf32>
    %c0_3 = arith.constant 0 : index
    %c0_4 = arith.constant 0 : index
    %3 = vector.load %arg3[%c0_3, %c0_4] : memref<1x128xf32, #tpu.memory_space<vmem>>, vector<1x128xf32>
    %4 = vector.broadcast %3 : vector<1x128xf32> to vector<16x128xf32>
    %5 = arith.addf %2, %4 : vector<16x128xf32>
    %c0_5 = arith.constant 0 : index
    %c0_6 = arith.constant 0 : index
    %6 = vector.load %arg4[%c0_5, %c0_6] : memref<16x128xf32, #tpu.memory_space<vmem>>, vector<16x128xf32>
    tpu.vector_store %arg4[%c0_5, %c0_6], %5 {strides = array<i32>} : memref<16x128xf32, #tpu.memory_space<vmem>>, vector<16x128xf32>,
    return
  }
  func.func @transform_0(%arg0: i32) -> (i32, i32) {
    %c0_i32 = arith.constant 0 : i32
    %c0_i32_0 = arith.constant 0 : i32
    return %arg0, %c0_i32 : i32, i32
  }
  func.func @transform_1(%arg0: i32) -> (i32, i32) {
    %c0_i32 = arith.constant 0 : i32
    %c0_i32_0 = arith.constant 0 : i32
    %c0_i32_1 = arith.constant 0 : i32
    return %c0_i32, %c0_i32_0 : i32, i32
  }
  func.func @transform_2(%arg0: i32) -> (i32, i32) {
    %c0_i32 = arith.constant 0 : i32
    %c0_i32_0 = arith.constant 0 : i32
    %c0_i32_1 = arith.constant 0 : i32
    return %c0_i32, %c0_i32_0 : i32, i32
  }
  func.func @transform_3(%arg0: i32) -> (i32, i32) {
    %c0_i32 = arith.constant 0 : i32
    %c0_i32_0 = arith.constant 0 : i32
    return %arg0, %c0_i32 : i32, i32
  }
}

</mosaic_0001>

<llo_original>
// kernel: forward.3
$region0: #{forward.3}
  #allocation0 [shape = 'u32[]', space=smem, size = 0x4, offset = 0x4, fixed_abs, tag = 'smem constant byte address 0x4 - core index']
  #allocation1 [shape = 'u32[72,128]{1,0:T(1,128)}', space=vmem, size = 0x9000, scoped, tag = 'internal scratch']
  %s0 = inlined_call_operand.vmem [shape: bf16[288,25], index: 0, kind: input, shape index: {}]
  %s1 = inlined_call_operand.vmem [shape: bf16[288,25], index: 1, kind: input, shape index: {}]
  %s2 = inlined_call_operand.vmem [shape: bf16[288,25], index: 2, kind: input, shape index: {}]
  %s3 = inlined_call_operand.vmem [shape: bf16[288,25], index: 3, kind: input, shape index: {}]
  %s4 = inlined_call_operand.vmem [shape: bf16[25,128], index: 4, kind: input, shape index: {}]
  %s5 = inlined_call_operand.vmem [shape: f32[1,128], index: 5, kind: input, shape index: {}]
  %s6 = inlined_call_operand.vmem [shape: bf16[288,128], index: 6, kind: output, shape index: {}]
  %s7 = sld [smem:[#allocation0]]
  $region34: #{forward.3} parent=0
    _
  %s9 = ssub.s32 1, %s7
  %s10 = scalar_select 0, %s9, %s7
  // Predicated region
  $region2: #{forward.3} parent=0 // pred_check
    _
  $region3: #{forward.3} parent=0 // pred_check_branch
    %12 = sbr.rel (0) target = $region5
  $region4: #{forward.3} parent=0 // pred_region
    _
  $region5: #{forward.3} parent=0 // pred_fallthru
    _
  // Predicated region
  $region6: #{forward.3} parent=0 // pred_check
    _
  $region7: #{forward.3} parent=0 // pred_check_branch
    %14 = sbr.rel (0) target = $region9
  $region8: #{forward.3} parent=0 // pred_region
    _
  $region9: #{forward.3} parent=0 // pred_fallthru
    _
  // Predicated region
  $region10: #{forward.3} parent=0 // pred_check
    _
  $region11: #{forward.3} parent=0 // pred_check_branch
    %16 = sbr.rel (0) target = $region13
  $region12: #{forward.3} parent=0 // pred_region
    _
  $region13: #{forward.3} parent=0 // pred_fallthru
    _
  // Predicated region
  $region14: #{forward.3} parent=0 // pred_check
    _
  $region15: #{forward.3} parent=0 // pred_check_branch
    %18 = sbr.rel (0) target = $region17
  $region16: #{forward.3} parent=0 // pred_region
    _
  $region17: #{forward.3} parent=0 // pred_fallthru
    _
  // Predicated region
  $region18: #{forward.3} parent=0 // pred_check
    _
  $region19: #{forward.3} parent=0 // pred_check_branch
    %20 = sbr.rel (0) target = $region21
  $region20: #{forward.3} parent=0 // pred_region
    _
  $region21: #{forward.3} parent=0 // pred_fallthru
    _
  // Predicated region
  $region22: #{forward.3} parent=0 // pred_check
    _
  $region23: #{forward.3} parent=0 // pred_check_branch
    %22 = sbr.rel (0) target = $region25
  $region24: #{forward.3} parent=0 // pred_region
    _
  $region25: #{forward.3} parent=0 // pred_fallthru
    _
  %v24 = vld [vmem:[%s4] sm:$0xf]
  %v25 = vld [vmem:[%s4 + $0x4] sm:$0xf]
  %v26 = vld [vmem:[%s4 + $0x8] sm:$0xf]
  %v27 = vld [vmem:[%s4 + $0xc] sm:$0x1]
  %v28 = vld [vmem:[%s0] sm:$0xf]
  %v29 = vld [vmem:[%s0 + $0x4] sm:$0xf]
  %v30 = vld [vmem:[%s0 + $0x8] sm:$0xf]
  %v31 = vld [vmem:[%s0 + $0xc] sm:$0xf]
  %v32 = vld [vmem:[%s0 + $0x10] sm:$0xf]
  %v33 = vld [vmem:[%s0 + $0x14] sm:$0xf]
  %v34 = vld [vmem:[%s0 + $0x18] sm:$0xf]
  %v35 = vld [vmem:[%s0 + $0x1c] sm:$0xf]
  %v36 = vld [vmem:[%s0 + $0x20] sm:$0xf]
  %v37 = vld [vmem:[%s0 + $0x24] sm:$0xf]
  %v38 = vld [vmem:[%s0 + $0x28] sm:$0xf]
  %v39 = vld [vmem:[%s0 + $0x2c] sm:$0xf]
  %v40 = vld [vmem:[%s0 + $0x30] sm:$0xf]
  %v41 = vld [vmem:[%s0 + $0x34] sm:$0xf]
  %v42 = vld [vmem:[%s0 + $0x38] sm:$0xf]
  %v43 = vld [vmem:[%s0 + $0x3c] sm:$0xf]
  %v44 = vld [vmem:[%s0 + $0x40] sm:$0xf]
  %v45 = vld [vmem:[%s0 + $0x44] sm:$0xf]
  %v46 = vld [vmem:[%s0 + $0x48] sm:$0xf]
  %v47 = vld [vmem:[%s0 + $0x4c] sm:$0xf]
  %v48 = vld [vmem:[%s0 + $0x50] sm:$0xf]
  %v49 = vld [vmem:[%s0 + $0x54] sm:$0xf]
  %v50 = vld [vmem:[%s0 + $0x58] sm:$0xf]
  %v51 = vld [vmem:[%s0 + $0x5c] sm:$0xf]
  %v52 = vld [vmem:[%s0 + $0x60] sm:$0xf]
  %v53 = vld [vmem:[%s0 + $0x64] sm:$0xf]
  %v54 = vld [vmem:[%s0 + $0x68] sm:$0xf]
  %v55 = vld [vmem:[%s0 + $0x6c] sm:$0xf]
  %v56 = vld [vmem:[%s0 + $0x70] sm:$0xf]
  %v57 = vld [vmem:[%s0 + $0x74] sm:$0xf]
  %v58 = vld [vmem:[%s0 + $0x78] sm:$0xf]
  %v59 = vld [vmem:[%s0 + $0x7c] sm:$0xf]
  %v60 = vld [vmem:[%s0 + $0x80] sm:$0xf]
  %v61 = vld [vmem:[%s0 + $0x84] sm:$0xf]
  %v62 = vld [vmem:[%s0 + $0x88] sm:$0xf]
  %v63 = vld [vmem:[%s0 + $0x8c] sm:$0xf]
  %v100 = vunpack.c.l.b16 %v28
  %v101 = vunpack.c.l.b16 %v29
  %v102 = vunpack.c.l.b16 %v30
  %v103 = vunpack.c.l.b16 %v31
  %v104 = vunpack.c.l.b16 %v32
  %v105 = vunpack.c.l.b16 %v33
  %v106 = vunpack.c.l.b16 %v34
  %v107 = vunpack.c.l.b16 %v35
  %v108 = vunpack.c.l.b16 %v36
  %v109 = vunpack.c.l.b16 %v37
  %v110 = vunpack.c.l.b16 %v38
  %v111 = vunpack.c.l.b16 %v39
  %v112 = vunpack.c.l.b16 %v40
  %v113 = vunpack.c.l.b16 %v41
  %v114 = vunpack.c.l.b16 %v42
  %v115 = vunpack.c.l.b16 %v43
  %v116 = vunpack.c.l.b16 %v44
  %v117 = vunpack.c.l.b16 %v45
  %v118 = vunpack.c.l.b16 %v46
  %v119 = vunpack.c.l.b16 %v47
  %v120 = vunpack.c.l.b16 %v48
  %v121 = vunpack.c.l.b16 %v49
  %v122 = vunpack.c.l.b16 %v50
  %v123 = vunpack.c.l.b16 %v51
  %v124 = vunpack.c.l.b16 %v52
  %v125 = vunpack.c.l.b16 %v53
  %v126 = vunpack.c.l.b16 %v54
  %v127 = vunpack.c.l.b16 %v55
  %v128 = vunpack.c.l.b16 %v56
  %v129 = vunpack.c.l.b16 %v57
  %v130 = vunpack.c.l.b16 %v58
  %v131 = vunpack.c.l.b16 %v59
  %v132 = vunpack.c.l.b16 %v60
  %v133 = vunpack.c.l.b16 %v61
  %v134 = vunpack.c.l.b16 %v62
  %v135 = vunpack.c.l.b16 %v63
  %v136 = vpack.c.b16 %v101, %v100
  %v137 = vpack.c.b16 %v103, %v102
  %v138 = vpack.c.b16 %v105, %v104
  %v139 = vpack.c.b16 %v107, %v106
  %v140 = vpack.c.b16 %v109, %v108
  %v141 = vpack.c.b16 %v111, %v110
  %v142 = vpack.c.b16 %v113, %v112
  %v143 = vpack.c.b16 %v115, %v114
  %v144 = vpack.c.b16 %v117, %v116
  %v145 = vpack.c.b16 %v119, %v118
  %v146 = vpack.c.b16 %v121, %v120
  %v147 = vpack.c.b16 %v123, %v122
  %v148 = vpack.c.b16 %v125, %v124
  %v149 = vpack.c.b16 %v127, %v126
  %v150 = vpack.c.b16 %v129, %v128
  %v151 = vpack.c.b16 %v131, %v130
  %v152 = vpack.c.b16 %v133, %v132
  %v153 = vpack.c.b16 %v135, %v134
  %v158 = vunpack.c.l.b16 %v24
  %v159 = vunpack.c.l.b16 %v25
  %v160 = vunpack.c.l.b16 %v26
  %v161 = vunpack.c.l.b16 %v27
  %v162 = vpack.c.b16 %v159, %v158
  %v163 = vpack.c.b16 %v161, %v160
  %vm165 = vcmask 203776
  %v167 = vsel %vm165, %v136, 0
  %v170 = vsel %vm165, %v137, 0
  %v173 = vsel %vm165, %v138, 0
  %v176 = vsel %vm165, %v139, 0
  %v179 = vsel %vm165, %v140, 0
  %v182 = vsel %vm165, %v141, 0
  %v185 = vsel %vm165, %v142, 0
  %v188 = vsel %vm165, %v143, 0
  %v191 = vsel %vm165, %v144, 0
  %v194 = vsel %vm165, %v145, 0
  %v197 = vsel %vm165, %v146, 0
  %v200 = vsel %vm165, %v147, 0
  %v203 = vsel %vm165, %v148, 0
  %v206 = vsel %vm165, %v149, 0
  %v209 = vsel %vm165, %v150, 0
  %v212 = vsel %vm165, %v151, 0
  %v215 = vsel %vm165, %v152, 0
  %v218 = vsel %vm165, %v153, 0
  %vm220 = vcmask 1043456
  %vm221 = vcmask 1044480
  %v222 = vsel %vm220, 4294967295, 65535
  %v223 = vsel %vm221, %v222, 0
  %v225 = vand.u32 %v163, %v223
  %227 = vmatpush.bf16.msra.mxu0 0
  %228 = vmatpush.bf16.msra.mxu0 0
  %229 = vmatpush.bf16.msra.mxu0 0
  %230 = vmatpush.bf16.msra.mxu0 0
  %231 = vmatpush.bf16.msra.mxu0 0
  %232 = vmatpush.bf16.msra.mxu0 0
  %233 = vmatpush.bf16.msra.mxu0 %v225
  %234 = vmatpush.bf16.msra.mxu0 %v162
  %235 = vmatmul.bf16.gmra.mxu0 %v167
  %v236 = vpop.f32.mrf.mxu0
  %v237 = vadd.f32 0.0, %v236
  %v238 = vpop.f32.mrf.mxu0
  %v239 = vadd.f32 0.0, %v238
  %240 = vmatmul.bf16.gmra.mxu0 %v170
  %v241 = vpop.f32.mrf.mxu0
  %v242 = vadd.f32 0.0, %v241
  %v243 = vpop.f32.mrf.mxu0
  %v244 = vadd.f32 0.0, %v243
  %245 = vmatmul.bf16.gmra.mxu0 %v173
  %v246 = vpop.f32.mrf.mxu0
  %v247 = vadd.f32 0.0, %v246
  %v248 = vpop.f32.mrf.mxu0
  %v249 = vadd.f32 0.0, %v248
  %250 = vmatmul.bf16.gmra.mxu0 %v176
  %v251 = vpop.f32.mrf.mxu0
  %v252 = vadd.f32 0.0, %v251
  %v253 = vpop.f32.mrf.mxu0
  %v254 = vadd.f32 0.0, %v253
  %255 = vmatmul.bf16.gmra.mxu0 %v179
  %v256 = vpop.f32.mrf.mxu0
  %v257 = vadd.f32 0.0, %v256
  %v258 = vpop.f32.mrf.mxu0
  %v259 = vadd.f32 0.0, %v258
  %260 = vmatmul.bf16.gmra.mxu0 %v182
  %v261 = vpop.f32.mrf.mxu0
  %v262 = vadd.f32 0.0, %v261
  %v263 = vpop.f32.mrf.mxu0
  %v264 = vadd.f32 0.0, %v263
  %265 = vmatmul.bf16.gmra.mxu0 %v185
  %v266 = vpop.f32.mrf.mxu0
  %v267 = vadd.f32 0.0, %v266
  %v268 = vpop.f32.mrf.mxu0
  %v269 = vadd.f32 0.0, %v268
  %270 = vmatmul.bf16.gmra.mxu0 %v188
  %v271 = vpop.f32.mrf.mxu0
  %v272 = vadd.f32 0.0, %v271
  %v273 = vpop.f32.mrf.mxu0
  %v274 = vadd.f32 0.0, %v273
  %275 = vmatmul.bf16.gmra.mxu0 %v191
  %v276 = vpop.f32.mrf.mxu0
  %v277 = vadd.f32 0.0, %v276
  %v278 = vpop.f32.mrf.mxu0
  %v279 = vadd.f32 0.0, %v278
  %280 = vmatmul.bf16.gmra.mxu0 %v194
  %v281 = vpop.f32.mrf.mxu0
  %v282 = vadd.f32 0.0, %v281
  %v283 = vpop.f32.mrf.mxu0
  %v284 = vadd.f32 0.0, %v283
  %285 = vmatmul.bf16.gmra.mxu0 %v197
  %v286 = vpop.f32.mrf.mxu0
  %v287 = vadd.f32 0.0, %v286
  %v288 = vpop.f32.mrf.mxu0
  %v289 = vadd.f32 0.0, %v288
  %290 = vmatmul.bf16.gmra.mxu0 %v200
  %v291 = vpop.f32.mrf.mxu0
  %v292 = vadd.f32 0.0, %v291
  %v293 = vpop.f32.mrf.mxu0
  %v294 = vadd.f32 0.0, %v293
  %295 = vmatmul.bf16.gmra.mxu0 %v203
  %v296 = vpop.f32.mrf.mxu0
  %v297 = vadd.f32 0.0, %v296
  %v298 = vpop.f32.mrf.mxu0
  %v299 = vadd.f32 0.0, %v298
  %300 = vmatmul.bf16.gmra.mxu0 %v206
  %v301 = vpop.f32.mrf.mxu0
  %v302 = vadd.f32 0.0, %v301
  %v303 = vpop.f32.mrf.mxu0
  %v304 = vadd.f32 0.0, %v303
  %305 = vmatmul.bf16.gmra.mxu0 %v209
  %v306 = vpop.f32.mrf.mxu0
  %v307 = vadd.f32 0.0, %v306
  %v308 = vpop.f32.mrf.mxu0
  %v309 = vadd.f32 0.0, %v308
  %310 = vmatmul.bf16.gmra.mxu0 %v212
  %v311 = vpop.f32.mrf.mxu0
  %v312 = vadd.f32 0.0, %v311
  %v313 = vpop.f32.mrf.mxu0
  %v314 = vadd.f32 0.0, %v313
  %315 = vmatmul.bf16.gmra.mxu0 %v215
  %v316 = vpop.f32.mrf.mxu0
  %v317 = vadd.f32 0.0, %v316
  %v318 = vpop.f32.mrf.mxu0
  %v319 = vadd.f32 0.0, %v318
  %320 = vmatmul.bf16.gmra.mxu0 %v218
  %v321 = vpop.f32.mrf.mxu0
  %v322 = vadd.f32 0.0, %v321
  %v323 = vpop.f32.mrf.mxu0
  %v324 = vadd.f32 0.0, %v323
  %325 = vdwg.mxu0
  %v326 = vld [vmem:[%s1] sm:$0xf]
  %v327 = vld [vmem:[%s1 + $0x4] sm:$0xf]
  %v328 = vld [vmem:[%s1 + $0x8] sm:$0xf]
  %v329 = vld [vmem:[%s1 + $0xc] sm:$0xf]
  %v330 = vld [vmem:[%s1 + $0x10] sm:$0xf]
  %v331 = vld [vmem:[%s1 + $0x14] sm:$0xf]
  %v332 = vld [vmem:[%s1 + $0x18] sm:$0xf]
  %v333 = vld [vmem:[%s1 + $0x1c] sm:$0xf]
  %v334 = vld [vmem:[%s1 + $0x20] sm:$0xf]
  %v335 = vld [vmem:[%s1 + $0x24] sm:$0xf]
  %v336 = vld [vmem:[%s1 + $0x28] sm:$0xf]
  %v337 = vld [vmem:[%s1 + $0x2c] sm:$0xf]
  %v338 = vld [vmem:[%s1 + $0x30] sm:$0xf]
  %v339 = vld [vmem:[%s1 + $0x34] sm:$0xf]
  %v340 = vld [vmem:[%s1 + $0x38] sm:$0xf]
  %v341 = vld [vmem:[%s1 + $0x3c] sm:$0xf]
  %v342 = vld [vmem:[%s1 + $0x40] sm:$0xf]
  %v343 = vld [vmem:[%s1 + $0x44] sm:$0xf]
  %v344 = vld [vmem:[%s1 + $0x48] sm:$0xf]
  %v345 = vld [vmem:[%s1 + $0x4c] sm:$0xf]
  %v346 = vld [vmem:[%s1 + $0x50] sm:$0xf]
  %v347 = vld [vmem:[%s1 + $0x54] sm:$0xf]
  %v348 = vld [vmem:[%s1 + $0x58] sm:$0xf]
  %v349 = vld [vmem:[%s1 + $0x5c] sm:$0xf]
  %v350 = vld [vmem:[%s1 + $0x60] sm:$0xf]
  %v351 = vld [vmem:[%s1 + $0x64] sm:$0xf]
  %v352 = vld [vmem:[%s1 + $0x68] sm:$0xf]
  %v353 = vld [vmem:[%s1 + $0x6c] sm:$0xf]
  %v354 = vld [vmem:[%s1 + $0x70] sm:$0xf]
  %v355 = vld [vmem:[%s1 + $0x74] sm:$0xf]
  %v356 = vld [vmem:[%s1 + $0x78] sm:$0xf]
  %v357 = vld [vmem:[%s1 + $0x7c] sm:$0xf]
  %v358 = vld [vmem:[%s1 + $0x80] sm:$0xf]
  %v359 = vld [vmem:[%s1 + $0x84] sm:$0xf]
  %v360 = vld [vmem:[%s1 + $0x88] sm:$0xf]
  %v361 = vld [vmem:[%s1 + $0x8c] sm:$0xf]
  %v398 = vunpack.c.l.b16 %v326
  %v399 = vunpack.c.l.b16 %v327
  %v400 = vunpack.c.l.b16 %v328
  %v401 = vunpack.c.l.b16 %v329
  %v402 = vunpack.c.l.b16 %v330
  %v403 = vunpack.c.l.b16 %v331
  %v404 = vunpack.c.l.b16 %v332
  %v405 = vunpack.c.l.b16 %v333
  %v406 = vunpack.c.l.b16 %v334
  %v407 = vunpack.c.l.b16 %v335
  %v408 = vunpack.c.l.b16 %v336
  %v409 = vunpack.c.l.b16 %v337
  %v410 = vunpack.c.l.b16 %v338
  %v411 = vunpack.c.l.b16 %v339
  %v412 = vunpack.c.l.b16 %v340
  %v413 = vunpack.c.l.b16 %v341
  %v414 = vunpack.c.l.b16 %v342
  %v415 = vunpack.c.l.b16 %v343
  %v416 = vunpack.c.l.b16 %v344
  %v417 = vunpack.c.l.b16 %v345
  %v418 = vunpack.c.l.b16 %v346
  %v419 = vunpack.c.l.b16 %v347
  %v420 = vunpack.c.l.b16 %v348
  %v421 = vunpack.c.l.b16 %v349
  %v422 = vunpack.c.l.b16 %v350
  %v423 = vunpack.c.l.b16 %v351
  %v424 = vunpack.c.l.b16 %v352
  %v425 = vunpack.c.l.b16 %v353
  %v426 = vunpack.c.l.b16 %v354
  %v427 = vunpack.c.l.b16 %v355
  %v428 = vunpack.c.l.b16 %v356
  %v429 = vunpack.c.l.b16 %v357
  %v430 = vunpack.c.l.b16 %v358
  %v431 = vunpack.c.l.b16 %v359
  %v432 = vunpack.c.l.b16 %v360
  %v433 = vunpack.c.l.b16 %v361
  %v434 = vpack.c.b16 %v399, %v398
  %v435 = vpack.c.b16 %v401, %v400
  %v436 = vpack.c.b16 %v403, %v402
  %v437 = vpack.c.b16 %v405, %v404
  %v438 = vpack.c.b16 %v407, %v406
  %v439 = vpack.c.b16 %v409, %v408
  %v440 = vpack.c.b16 %v411, %v410
  %v441 = vpack.c.b16 %v413, %v412
  %v442 = vpack.c.b16 %v415, %v414
  %v443 = vpack.c.b16 %v417, %v416
  %v444 = vpack.c.b16 %v419, %v418
  %v445 = vpack.c.b16 %v421, %v420
  %v446 = vpack.c.b16 %v423, %v422
  %v447 = vpack.c.b16 %v425, %v424
  %v448 = vpack.c.b16 %v427, %v426
  %v449 = vpack.c.b16 %v429, %v428
  %v450 = vpack.c.b16 %v431, %v430
  %v451 = vpack.c.b16 %v433, %v432
  %v453 = vsel %vm165, %v434, 0
  %v456 = vsel %vm165, %v435, 0
  %v459 = vsel %vm165, %v436, 0
  %v462 = vsel %vm165, %v437, 0
  %v465 = vsel %vm165, %v438, 0
  %v468 = vsel %vm165, %v439, 0
  %v471 = vsel %vm165, %v440, 0
  %v474 = vsel %vm165, %v441, 0
  %v477 = vsel %vm165, %v442, 0
  %v480 = vsel %vm165, %v443, 0
  %v483 = vsel %vm165, %v444, 0
  %v486 = vsel %vm165, %v445, 0
  %v489 = vsel %vm165, %v446, 0
  %v492 = vsel %vm165, %v447, 0
  %v495 = vsel %vm165, %v448, 0
  %v498 = vsel %vm165, %v449, 0
  %v501 = vsel %vm165, %v450, 0
  %v504 = vsel %vm165, %v451, 0
  %506 = vmatpush.bf16.msra.mxu0 0
  %507 = vmatpush.bf16.msra.mxu0 0
  %508 = vmatpush.bf16.msra.mxu0 0
  %509 = vmatpush.bf16.msra.mxu0 0
  %510 = vmatpush.bf16.msra.mxu0 0
  %511 = vmatpush.bf16.msra.mxu0 0
  %512 = vmatpush.bf16.msra.mxu0 %v225
  %513 = vmatpush.bf16.msra.mxu0 %v162
  %514 = vmatmul.bf16.gmra.mxu0 %v453
  %v515 = vpop.f32.mrf.mxu0
  %v516 = vadd.f32 0.0, %v515
  %v517 = vpop.f32.mrf.mxu0
  %v518 = vadd.f32 0.0, %v517
  %519 = vmatmul.bf16.gmra.mxu0 %v456
  %v520 = vpop.f32.mrf.mxu0
  %v521 = vadd.f32 0.0, %v520
  %v522 = vpop.f32.mrf.mxu0
  %v523 = vadd.f32 0.0, %v522
  %524 = vmatmul.bf16.gmra.mxu0 %v459
  %v525 = vpop.f32.mrf.mxu0
  %v526 = vadd.f32 0.0, %v525
  %v527 = vpop.f32.mrf.mxu0
  %v528 = vadd.f32 0.0, %v527
  %529 = vmatmul.bf16.gmra.mxu0 %v462
  %v530 = vpop.f32.mrf.mxu0
  %v531 = vadd.f32 0.0, %v530
  %v532 = vpop.f32.mrf.mxu0
  %v533 = vadd.f32 0.0, %v532
  %534 = vmatmul.bf16.gmra.mxu0 %v465
  %v535 = vpop.f32.mrf.mxu0
  %v536 = vadd.f32 0.0, %v535
  %v537 = vpop.f32.mrf.mxu0
  %v538 = vadd.f32 0.0, %v537
  %539 = vmatmul.bf16.gmra.mxu0 %v468
  %v540 = vpop.f32.mrf.mxu0
  %v541 = vadd.f32 0.0, %v540
  %v542 = vpop.f32.mrf.mxu0
  %v543 = vadd.f32 0.0, %v542
  %544 = vmatmul.bf16.gmra.mxu0 %v471
  %v545 = vpop.f32.mrf.mxu0
  %v546 = vadd.f32 0.0, %v545
  %v547 = vpop.f32.mrf.mxu0
  %v548 = vadd.f32 0.0, %v547
  %549 = vmatmul.bf16.gmra.mxu0 %v474
  %v550 = vpop.f32.mrf.mxu0
  %v551 = vadd.f32 0.0, %v550
  %v552 = vpop.f32.mrf.mxu0
  %v553 = vadd.f32 0.0, %v552
  %554 = vmatmul.bf16.gmra.mxu0 %v477
  %v555 = vpop.f32.mrf.mxu0
  %v556 = vadd.f32 0.0, %v555
  %v557 = vpop.f32.mrf.mxu0
  %v558 = vadd.f32 0.0, %v557
  %559 = vmatmul.bf16.gmra.mxu0 %v480
  %v560 = vpop.f32.mrf.mxu0
  %v561 = vadd.f32 0.0, %v560
  %v562 = vpop.f32.mrf.mxu0
  %v563 = vadd.f32 0.0, %v562
  %564 = vmatmul.bf16.gmra.mxu0 %v483
  %v565 = vpop.f32.mrf.mxu0
  %v566 = vadd.f32 0.0, %v565
  %v567 = vpop.f32.mrf.mxu0
  %v568 = vadd.f32 0.0, %v567
  %569 = vmatmul.bf16.gmra.mxu0 %v486
  %v570 = vpop.f32.mrf.mxu0
  %v571 = vadd.f32 0.0, %v570
  %v572 = vpop.f32.mrf.mxu0
  %v573 = vadd.f32 0.0, %v572
  %574 = vmatmul.bf16.gmra.mxu0 %v489
  %v575 = vpop.f32.mrf.mxu0
  %v576 = vadd.f32 0.0, %v575
  %v577 = vpop.f32.mrf.mxu0
  %v578 = vadd.f32 0.0, %v577
  %579 = vmatmul.bf16.gmra.mxu0 %v492
  %v580 = vpop.f32.mrf.mxu0
  %v581 = vadd.f32 0.0, %v580
  %v582 = vpop.f32.mrf.mxu0
  %v583 = vadd.f32 0.0, %v582
  %584 = vmatmul.bf16.gmra.mxu0 %v495
  %v585 = vpop.f32.mrf.mxu0
  %v586 = vadd.f32 0.0, %v585
  %v587 = vpop.f32.mrf.mxu0
  %v588 = vadd.f32 0.0, %v587
  %589 = vmatmul.bf16.gmra.mxu0 %v498
  %v590 = vpop.f32.mrf.mxu0
  %v591 = vadd.f32 0.0, %v590
  %v592 = vpop.f32.mrf.mxu0
  %v593 = vadd.f32 0.0, %v592
  %594 = vmatmul.bf16.gmra.mxu0 %v501
  %v595 = vpop.f32.mrf.mxu0
  %v596 = vadd.f32 0.0, %v595
  %v597 = vpop.f32.mrf.mxu0
  %v598 = vadd.f32 0.0, %v597
  %599 = vmatmul.bf16.gmra.mxu0 %v504
  %v600 = vpop.f32.mrf.mxu0
  %v601 = vadd.f32 0.0, %v600
  %v602 = vpop.f32.mrf.mxu0
  %v603 = vadd.f32 0.0, %v602
  %604 = vdwg.mxu0
  %v605 = vmax.f32 %v237, %v516
  %v606 = vmax.f32 %v239, %v518
  %v607 = vmax.f32 %v242, %v521
  %v608 = vmax.f32 %v244, %v523
  %v609 = vmax.f32 %v247, %v526
  %v610 = vmax.f32 %v249, %v528
  %v611 = vmax.f32 %v252, %v531
  %v612 = vmax.f32 %v254, %v533
  %v613 = vmax.f32 %v257, %v536
  %v614 = vmax.f32 %v259, %v538
  %v615 = vmax.f32 %v262, %v541
  %v616 = vmax.f32 %v264, %v543
  %v617 = vmax.f32 %v267, %v546
  %v618 = vmax.f32 %v269, %v548
  %v619 = vmax.f32 %v272, %v551
  %v620 = vmax.f32 %v274, %v553
  %v621 = vmax.f32 %v277, %v556
  %v622 = vmax.f32 %v279, %v558
  %v623 = vmax.f32 %v282, %v561
  %v624 = vmax.f32 %v284, %v563
  %v625 = vmax.f32 %v287, %v566
  %v626 = vmax.f32 %v289, %v568
  %v627 = vmax.f32 %v292, %v571
  %v628 = vmax.f32 %v294, %v573
  %v629 = vmax.f32 %v297, %v576
  %v630 = vmax.f32 %v299, %v578
  %v631 = vmax.f32 %v302, %v581
  %v632 = vmax.f32 %v304, %v583
  %v633 = vmax.f32 %v307, %v586
  %v634 = vmax.f32 %v309, %v588
  %v635 = vmax.f32 %v312, %v591
  %v636 = vmax.f32 %v314, %v593
  %v637 = vmax.f32 %v317, %v596
  %v638 = vmax.f32 %v319, %v598
  %v639 = vmax.f32 %v322, %v601
  %v640 = vmax.f32 %v324, %v603
  %v641 = vld [vmem:[%s2] sm:$0xf]
  %v642 = vld [vmem:[%s2 + $0x4] sm:$0xf]
  %v643 = vld [vmem:[%s2 + $0x8] sm:$0xf]
  %v644 = vld [vmem:[%s2 + $0xc] sm:$0xf]
  %v645 = vld [vmem:[%s2 + $0x10] sm:$0xf]
  %v646 = vld [vmem:[%s2 + $0x14] sm:$0xf]
  %v647 = vld [vmem:[%s2 + $0x18] sm:$0xf]
  %v648 = vld [vmem:[%s2 + $0x1c] sm:$0xf]
  %v649 = vld [vmem:[%s2 + $0x20] sm:$0xf]
  %v650 = vld [vmem:[%s2 + $0x24] sm:$0xf]
  %v651 = vld [vmem:[%s2 + $0x28] sm:$0xf]
  %v652 = vld [vmem:[%s2 + $0x2c] sm:$0xf]
  %v653 = vld [vmem:[%s2 + $0x30] sm:$0xf]
  %v654 = vld [vmem:[%s2 + $0x34] sm:$0xf]
  %v655 = vld [vmem:[%s2 + $0x38] sm:$0xf]
  %v656 = vld [vmem:[%s2 + $0x3c] sm:$0xf]
  %v657 = vld [vmem:[%s2 + $0x40] sm:$0xf]
  %v658 = vld [vmem:[%s2 + $0x44] sm:$0xf]
  %v659 = vld [vmem:[%s2 + $0x48] sm:$0xf]
  %v660 = vld [vmem:[%s2 + $0x4c] sm:$0xf]
  %v661 = vld [vmem:[%s2 + $0x50] sm:$0xf]
  %v662 = vld [vmem:[%s2 + $0x54] sm:$0xf]
  %v663 = vld [vmem:[%s2 + $0x58] sm:$0xf]
  %v664 = vld [vmem:[%s2 + $0x5c] sm:$0xf]
  %v665 = vld [vmem:[%s2 + $0x60] sm:$0xf]
  %v666 = vld [vmem:[%s2 + $0x64] sm:$0xf]
  %v667 = vld [vmem:[%s2 + $0x68] sm:$0xf]
  %v668 = vld [vmem:[%s2 + $0x6c] sm:$0xf]
  %v669 = vld [vmem:[%s2 + $0x70] sm:$0xf]
  %v670 = vld [vmem:[%s2 + $0x74] sm:$0xf]
  %v671 = vld [vmem:[%s2 + $0x78] sm:$0xf]
  %v672 = vld [vmem:[%s2 + $0x7c] sm:$0xf]
  %v673 = vld [vmem:[%s2 + $0x80] sm:$0xf]
  %v674 = vld [vmem:[%s2 + $0x84] sm:$0xf]
  %v675 = vld [vmem:[%s2 + $0x88] sm:$0xf]
  %v676 = vld [vmem:[%s2 + $0x8c] sm:$0xf]
  %v713 = vunpack.c.l.b16 %v641
  %v714 = vunpack.c.l.b16 %v642
  %v715 = vunpack.c.l.b16 %v643
  %v716 = vunpack.c.l.b16 %v644
  %v717 = vunpack.c.l.b16 %v645
  %v718 = vunpack.c.l.b16 %v646
  %v719 = vunpack.c.l.b16 %v647
  %v720 = vunpack.c.l.b16 %v648
  %v721 = vunpack.c.l.b16 %v649
  %v722 = vunpack.c.l.b16 %v650
  %v723 = vunpack.c.l.b16 %v651
  %v724 = vunpack.c.l.b16 %v652
  %v725 = vunpack.c.l.b16 %v653
  %v726 = vunpack.c.l.b16 %v654
  %v727 = vunpack.c.l.b16 %v655
  %v728 = vunpack.c.l.b16 %v656
  %v729 = vunpack.c.l.b16 %v657
  %v730 = vunpack.c.l.b16 %v658
  %v731 = vunpack.c.l.b16 %v659
  %v732 = vunpack.c.l.b16 %v660
  %v733 = vunpack.c.l.b16 %v661
  %v734 = vunpack.c.l.b16 %v662
  %v735 = vunpack.c.l.b16 %v663
  %v736 = vunpack.c.l.b16 %v664
  %v737 = vunpack.c.l.b16 %v665
  %v738 = vunpack.c.l.b16 %v666
  %v739 = vunpack.c.l.b16 %v667
  %v740 = vunpack.c.l.b16 %v668
  %v741 = vunpack.c.l.b16 %v669
  %v742 = vunpack.c.l.b16 %v670
  %v743 = vunpack.c.l.b16 %v671
  %v744 = vunpack.c.l.b16 %v672
  %v745 = vunpack.c.l.b16 %v673
  %v746 = vunpack.c.l.b16 %v674
  %v747 = vunpack.c.l.b16 %v675
  %v748 = vunpack.c.l.b16 %v676
  %v749 = vpack.c.b16 %v714, %v713
  %v750 = vpack.c.b16 %v716, %v715
  %v751 = vpack.c.b16 %v718, %v717
  %v752 = vpack.c.b16 %v720, %v719
  %v753 = vpack.c.b16 %v722, %v721
  %v754 = vpack.c.b16 %v724, %v723
  %v755 = vpack.c.b16 %v726, %v725
  %v756 = vpack.c.b16 %v728, %v727
  %v757 = vpack.c.b16 %v730, %v729
  %v758 = vpack.c.b16 %v732, %v731
  %v759 = vpack.c.b16 %v734, %v733
  %v760 = vpack.c.b16 %v736, %v735
  %v761 = vpack.c.b16 %v738, %v737
  %v762 = vpack.c.b16 %v740, %v739
  %v763 = vpack.c.b16 %v742, %v741
  %v764 = vpack.c.b16 %v744, %v743
  %v765 = vpack.c.b16 %v746, %v745
  %v766 = vpack.c.b16 %v748, %v747
  %v768 = vsel %vm165, %v749, 0
  %v771 = vsel %vm165, %v750, 0
  %v774 = vsel %vm165, %v751, 0
  %v777 = vsel %vm165, %v752, 0
  %v780 = vsel %vm165, %v753, 0
  %v783 = vsel %vm165, %v754, 0
  %v786 = vsel %vm165, %v755, 0
  %v789 = vsel %vm165, %v756, 0
  %v792 = vsel %vm165, %v757, 0
  %v795 = vsel %vm165, %v758, 0
  %v798 = vsel %vm165, %v759, 0
  %v801 = vsel %vm165, %v760, 0
  %v804 = vsel %vm165, %v761, 0
  %v807 = vsel %vm165, %v762, 0
  %v810 = vsel %vm165, %v763, 0
  %v813 = vsel %vm165, %v764, 0
  %v816 = vsel %vm165, %v765, 0
  %v819 = vsel %vm165, %v766, 0
  %821 = vmatpush.bf16.msra.mxu0 0
  %822 = vmatpush.bf16.msra.mxu0 0
  %823 = vmatpush.bf16.msra.mxu0 0
  %824 = vmatpush.bf16.msra.mxu0 0
  %825 = vmatpush.bf16.msra.mxu0 0
  %826 = vmatpush.bf16.msra.mxu0 0
  %827 = vmatpush.bf16.msra.mxu0 %v225
  %828 = vmatpush.bf16.msra.mxu0 %v162
  %829 = vmatmul.bf16.gmra.mxu0 %v768
  %v830 = vpop.f32.mrf.mxu0
  %v831 = vadd.f32 0.0, %v830
  %v832 = vpop.f32.mrf.mxu0
  %v833 = vadd.f32 0.0, %v832
  %834 = vmatmul.bf16.gmra.mxu0 %v771
  %v835 = vpop.f32.mrf.mxu0
  %v836 = vadd.f32 0.0, %v835
  %v837 = vpop.f32.mrf.mxu0
  %v838 = vadd.f32 0.0, %v837
  %839 = vmatmul.bf16.gmra.mxu0 %v774
  %v840 = vpop.f32.mrf.mxu0
  %v841 = vadd.f32 0.0, %v840
  %v842 = vpop.f32.mrf.mxu0
  %v843 = vadd.f32 0.0, %v842
  %844 = vmatmul.bf16.gmra.mxu0 %v777
  %v845 = vpop.f32.mrf.mxu0
  %v846 = vadd.f32 0.0, %v845
  %v847 = vpop.f32.mrf.mxu0
  %v848 = vadd.f32 0.0, %v847
  %849 = vmatmul.bf16.gmra.mxu0 %v780
  %v850 = vpop.f32.mrf.mxu0
  %v851 = vadd.f32 0.0, %v850
  %v852 = vpop.f32.mrf.mxu0
  %v853 = vadd.f32 0.0, %v852
  %854 = vmatmul.bf16.gmra.mxu0 %v783
  %v855 = vpop.f32.mrf.mxu0
  %v856 = vadd.f32 0.0, %v855
  %v857 = vpop.f32.mrf.mxu0
  %v858 = vadd.f32 0.0, %v857
  %859 = vmatmul.bf16.gmra.mxu0 %v786
  %v860 = vpop.f32.mrf.mxu0
  %v861 = vadd.f32 0.0, %v860
  %v862 = vpop.f32.mrf.mxu0
  %v863 = vadd.f32 0.0, %v862
  %864 = vmatmul.bf16.gmra.mxu0 %v789
  %v865 = vpop.f32.mrf.mxu0
  %v866 = vadd.f32 0.0, %v865
  %v867 = vpop.f32.mrf.mxu0
  %v868 = vadd.f32 0.0, %v867
  %869 = vmatmul.bf16.gmra.mxu0 %v792
  %v870 = vpop.f32.mrf.mxu0
  %v871 = vadd.f32 0.0, %v870
  %v872 = vpop.f32.mrf.mxu0
  %v873 = vadd.f32 0.0, %v872
  %874 = vmatmul.bf16.gmra.mxu0 %v795
  %v875 = vpop.f32.mrf.mxu0
  %v876 = vadd.f32 0.0, %v875
  %v877 = vpop.f32.mrf.mxu0
  %v878 = vadd.f32 0.0, %v877
  %879 = vmatmul.bf16.gmra.mxu0 %v798
  %v880 = vpop.f32.mrf.mxu0
  %v881 = vadd.f32 0.0, %v880
  %v882 = vpop.f32.mrf.mxu0
  %v883 = vadd.f32 0.0, %v882
  %884 = vmatmul.bf16.gmra.mxu0 %v801
  %v885 = vpop.f32.mrf.mxu0
  %v886 = vadd.f32 0.0, %v885
  %v887 = vpop.f32.mrf.mxu0
  %v888 = vadd.f32 0.0, %v887
  %889 = vmatmul.bf16.gmra.mxu0 %v804
  %v890 = vpop.f32.mrf.mxu0
  %v891 = vadd.f32 0.0, %v890
  %v892 = vpop.f32.mrf.mxu0
  %v893 = vadd.f32 0.0, %v892
  %894 = vmatmul.bf16.gmra.mxu0 %v807
  %v895 = vpop.f32.mrf.mxu0
  %v896 = vadd.f32 0.0, %v895
  %v897 = vpop.f32.mrf.mxu0
  %v898 = vadd.f32 0.0, %v897
  %899 = vmatmul.bf16.gmra.mxu0 %v810
  %v900 = vpop.f32.mrf.mxu0
  %v901 = vadd.f32 0.0, %v900
  %v902 = vpop.f32.mrf.mxu0
  %v903 = vadd.f32 0.0, %v902
  %904 = vmatmul.bf16.gmra.mxu0 %v813
  %v905 = vpop.f32.mrf.mxu0
  %v906 = vadd.f32 0.0, %v905
  %v907 = vpop.f32.mrf.mxu0
  %v908 = vadd.f32 0.0, %v907
  %909 = vmatmul.bf16.gmra.mxu0 %v816
  %v910 = vpop.f32.mrf.mxu0
  %v911 = vadd.f32 0.0, %v910
  %v912 = vpop.f32.mrf.mxu0
  %v913 = vadd.f32 0.0, %v912
  %914 = vmatmul.bf16.gmra.mxu0 %v819
  %v915 = vpop.f32.mrf.mxu0
  %v916 = vadd.f32 0.0, %v915
  %v917 = vpop.f32.mrf.mxu0
  %v918 = vadd.f32 0.0, %v917
  %919 = vdwg.mxu0
  %v920 = vmax.f32 %v605, %v831
  %v921 = vmax.f32 %v606, %v833
  %v922 = vmax.f32 %v607, %v836
  %v923 = vmax.f32 %v608, %v838
  %v924 = vmax.f32 %v609, %v841
  %v925 = vmax.f32 %v610, %v843
  %v926 = vmax.f32 %v611, %v846
  %v927 = vmax.f32 %v612, %v848
  %v928 = vmax.f32 %v613, %v851
  %v929 = vmax.f32 %v614, %v853
  %v930 = vmax.f32 %v615, %v856
  %v931 = vmax.f32 %v616, %v858
  %v932 = vmax.f32 %v617, %v861
  %v933 = vmax.f32 %v618, %v863
  %v934 = vmax.f32 %v619, %v866
  %v935 = vmax.f32 %v620, %v868
  %v936 = vmax.f32 %v621, %v871
  %v937 = vmax.f32 %v622, %v873
  %v938 = vmax.f32 %v623, %v876
  %v939 = vmax.f32 %v624, %v878
  %v940 = vmax.f32 %v625, %v881
  %v941 = vmax.f32 %v626, %v883
  %v942 = vmax.f32 %v627, %v886
  %v943 = vmax.f32 %v628, %v888
  %v944 = vmax.f32 %v629, %v891
  %v945 = vmax.f32 %v630, %v893
  %v946 = vmax.f32 %v631, %v896
  %v947 = vmax.f32 %v632, %v898
  %v948 = vmax.f32 %v633, %v901
  %v949 = vmax.f32 %v634, %v903
  %v950 = vmax.f32 %v635, %v906
  %v951 = vmax.f32 %v636, %v908
  %v952 = vmax.f32 %v637, %v911
  %v953 = vmax.f32 %v638, %v913
  %v954 = vmax.f32 %v639, %v916
  %v955 = vmax.f32 %v640, %v918
  %v956 = vld [vmem:[%s3] sm:$0xf]
  %v957 = vld [vmem:[%s3 + $0x4] sm:$0xf]
  %v958 = vld [vmem:[%s3 + $0x8] sm:$0xf]
  %v959 = vld [vmem:[%s3 + $0xc] sm:$0xf]
  %v960 = vld [vmem:[%s3 + $0x10] sm:$0xf]
  %v961 = vld [vmem:[%s3 + $0x14] sm:$0xf]
  %v962 = vld [vmem:[%s3 + $0x18] sm:$0xf]
  %v963 = vld [vmem:[%s3 + $0x1c] sm:$0xf]
  %v964 = vld [vmem:[%s3 + $0x20] sm:$0xf]
  %v965 = vld [vmem:[%s3 + $0x24] sm:$0xf]
  %v966 = vld [vmem:[%s3 + $0x28] sm:$0xf]
  %v967 = vld [vmem:[%s3 + $0x2c] sm:$0xf]
  %v968 = vld [vmem:[%s3 + $0x30] sm:$0xf]
  %v969 = vld [vmem:[%s3 + $0x34] sm:$0xf]
  %v970 = vld [vmem:[%s3 + $0x38] sm:$0xf]
  %v971 = vld [vmem:[%s3 + $0x3c] sm:$0xf]
  %v972 = vld [vmem:[%s3 + $0x40] sm:$0xf]
  %v973 = vld [vmem:[%s3 + $0x44] sm:$0xf]
  %v974 = vld [vmem:[%s3 + $0x48] sm:$0xf]
  %v975 = vld [vmem:[%s3 + $0x4c] sm:$0xf]
  %v976 = vld [vmem:[%s3 + $0x50] sm:$0xf]
  %v977 = vld [vmem:[%s3 + $0x54] sm:$0xf]
  %v978 = vld [vmem:[%s3 + $0x58] sm:$0xf]
  %v979 = vld [vmem:[%s3 + $0x5c] sm:$0xf]
  %v980 = vld [vmem:[%s3 + $0x60] sm:$0xf]
  %v981 = vld [vmem:[%s3 + $0x64] sm:$0xf]
  %v982 = vld [vmem:[%s3 + $0x68] sm:$0xf]
  %v983 = vld [vmem:[%s3 + $0x6c] sm:$0xf]
  %v984 = vld [vmem:[%s3 + $0x70] sm:$0xf]
  %v985 = vld [vmem:[%s3 + $0x74] sm:$0xf]
  %v986 = vld [vmem:[%s3 + $0x78] sm:$0xf]
  %v987 = vld [vmem:[%s3 + $0x7c] sm:$0xf]
  %v988 = vld [vmem:[%s3 + $0x80] sm:$0xf]
  %v989 = vld [vmem:[%s3 + $0x84] sm:$0xf]
  %v990 = vld [vmem:[%s3 + $0x88] sm:$0xf]
  %v991 = vld [vmem:[%s3 + $0x8c] sm:$0xf]
  %v1028 = vunpack.c.l.b16 %v956
  %v1029 = vunpack.c.l.b16 %v957
  %v1030 = vunpack.c.l.b16 %v958
  %v1031 = vunpack.c.l.b16 %v959
  %v1032 = vunpack.c.l.b16 %v960
  %v1033 = vunpack.c.l.b16 %v961
  %v1034 = vunpack.c.l.b16 %v962
  %v1035 = vunpack.c.l.b16 %v963
  %v1036 = vunpack.c.l.b16 %v964
  %v1037 = vunpack.c.l.b16 %v965
  %v1038 = vunpack.c.l.b16 %v966
  %v1039 = vunpack.c.l.b16 %v967
  %v1040 = vunpack.c.l.b16 %v968
  %v1041 = vunpack.c.l.b16 %v969
  %v1042 = vunpack.c.l.b16 %v970
  %v1043 = vunpack.c.l.b16 %v971
  %v1044 = vunpack.c.l.b16 %v972
  %v1045 = vunpack.c.l.b16 %v973
  %v1046 = vunpack.c.l.b16 %v974
  %v1047 = vunpack.c.l.b16 %v975
  %v1048 = vunpack.c.l.b16 %v976
  %v1049 = vunpack.c.l.b16 %v977
  %v1050 = vunpack.c.l.b16 %v978
  %v1051 = vunpack.c.l.b16 %v979
  %v1052 = vunpack.c.l.b16 %v980
  %v1053 = vunpack.c.l.b16 %v981
  %v1054 = vunpack.c.l.b16 %v982
  %v1055 = vunpack.c.l.b16 %v983
  %v1056 = vunpack.c.l.b16 %v984
  %v1057 = vunpack.c.l.b16 %v985
  %v1058 = vunpack.c.l.b16 %v986
  %v1059 = vunpack.c.l.b16 %v987
  %v1060 = vunpack.c.l.b16 %v988
  %v1061 = vunpack.c.l.b16 %v989
  %v1062 = vunpack.c.l.b16 %v990
  %v1063 = vunpack.c.l.b16 %v991
  %v1064 = vpack.c.b16 %v1029, %v1028
  %v1065 = vpack.c.b16 %v1031, %v1030
  %v1066 = vpack.c.b16 %v1033, %v1032
  %v1067 = vpack.c.b16 %v1035, %v1034
  %v1068 = vpack.c.b16 %v1037, %v1036
  %v1069 = vpack.c.b16 %v1039, %v1038
  %v1070 = vpack.c.b16 %v1041, %v1040
  %v1071 = vpack.c.b16 %v1043, %v1042
  %v1072 = vpack.c.b16 %v1045, %v1044
  %v1073 = vpack.c.b16 %v1047, %v1046
  %v1074 = vpack.c.b16 %v1049, %v1048
  %v1075 = vpack.c.b16 %v1051, %v1050
  %v1076 = vpack.c.b16 %v1053, %v1052
  %v1077 = vpack.c.b16 %v1055, %v1054
  %v1078 = vpack.c.b16 %v1057, %v1056
  %v1079 = vpack.c.b16 %v1059, %v1058
  %v1080 = vpack.c.b16 %v1061, %v1060
  %v1081 = vpack.c.b16 %v1063, %v1062
  %v1083 = vsel %vm165, %v1064, 0
  %v1086 = vsel %vm165, %v1065, 0
  %v1089 = vsel %vm165, %v1066, 0
  %v1092 = vsel %vm165, %v1067, 0
  %v1095 = vsel %vm165, %v1068, 0
  %v1098 = vsel %vm165, %v1069, 0
  %v1101 = vsel %vm165, %v1070, 0
  %v1104 = vsel %vm165, %v1071, 0
  %v1107 = vsel %vm165, %v1072, 0
  %v1110 = vsel %vm165, %v1073, 0
  %v1113 = vsel %vm165, %v1074, 0
  %v1116 = vsel %vm165, %v1075, 0
  %v1119 = vsel %vm165, %v1076, 0
  %v1122 = vsel %vm165, %v1077, 0
  %v1125 = vsel %vm165, %v1078, 0
  %v1128 = vsel %vm165, %v1079, 0
  %v1131 = vsel %vm165, %v1080, 0
  %v1134 = vsel %vm165, %v1081, 0
  %1136 = vmatpush.bf16.msra.mxu0 0
  %1137 = vmatpush.bf16.msra.mxu0 0
  %1138 = vmatpush.bf16.msra.mxu0 0
  %1139 = vmatpush.bf16.msra.mxu0 0
  %1140 = vmatpush.bf16.msra.mxu0 0
  %1141 = vmatpush.bf16.msra.mxu0 0
  %1142 = vmatpush.bf16.msra.mxu0 %v225
  %1143 = vmatpush.bf16.msra.mxu0 %v162
  %1144 = vmatmul.bf16.gmra.mxu0 %v1083
  %v1145 = vpop.f32.mrf.mxu0
  %v1146 = vadd.f32 0.0, %v1145
  %v1147 = vpop.f32.mrf.mxu0
  %v1148 = vadd.f32 0.0, %v1147
  %1149 = vmatmul.bf16.gmra.mxu0 %v1086
  %v1150 = vpop.f32.mrf.mxu0
  %v1151 = vadd.f32 0.0, %v1150
  %v1152 = vpop.f32.mrf.mxu0
  %v1153 = vadd.f32 0.0, %v1152
  %1154 = vmatmul.bf16.gmra.mxu0 %v1089
  %v1155 = vpop.f32.mrf.mxu0
  %v1156 = vadd.f32 0.0, %v1155
  %v1157 = vpop.f32.mrf.mxu0
  %v1158 = vadd.f32 0.0, %v1157
  %1159 = vmatmul.bf16.gmra.mxu0 %v1092
  %v1160 = vpop.f32.mrf.mxu0
  %v1161 = vadd.f32 0.0, %v1160
  %v1162 = vpop.f32.mrf.mxu0
  %v1163 = vadd.f32 0.0, %v1162
  %1164 = vmatmul.bf16.gmra.mxu0 %v1095
  %v1165 = vpop.f32.mrf.mxu0
  %v1166 = vadd.f32 0.0, %v1165
  %v1167 = vpop.f32.mrf.mxu0
  %v1168 = vadd.f32 0.0, %v1167
  %1169 = vmatmul.bf16.gmra.mxu0 %v1098
  %v1170 = vpop.f32.mrf.mxu0
  %v1171 = vadd.f32 0.0, %v1170
  %v1172 = vpop.f32.mrf.mxu0
  %v1173 = vadd.f32 0.0, %v1172
  %1174 = vmatmul.bf16.gmra.mxu0 %v1101
  %v1175 = vpop.f32.mrf.mxu0
  %v1176 = vadd.f32 0.0, %v1175
  %v1177 = vpop.f32.mrf.mxu0
  %v1178 = vadd.f32 0.0, %v1177
  %1179 = vmatmul.bf16.gmra.mxu0 %v1104
  %v1180 = vpop.f32.mrf.mxu0
  %v1181 = vadd.f32 0.0, %v1180
  %v1182 = vpop.f32.mrf.mxu0
  %v1183 = vadd.f32 0.0, %v1182
  %1184 = vmatmul.bf16.gmra.mxu0 %v1107
  %v1185 = vpop.f32.mrf.mxu0
  %v1186 = vadd.f32 0.0, %v1185
  %v1187 = vpop.f32.mrf.mxu0
  %v1188 = vadd.f32 0.0, %v1187
  %1189 = vmatmul.bf16.gmra.mxu0 %v1110
  %v1190 = vpop.f32.mrf.mxu0
  %v1191 = vadd.f32 0.0, %v1190
  %v1192 = vpop.f32.mrf.mxu0
  %v1193 = vadd.f32 0.0, %v1192
  %1194 = vmatmul.bf16.gmra.mxu0 %v1113
  %v1195 = vpop.f32.mrf.mxu0
  %v1196 = vadd.f32 0.0, %v1195
  %v1197 = vpop.f32.mrf.mxu0
  %v1198 = vadd.f32 0.0, %v1197
  %1199 = vmatmul.bf16.gmra.mxu0 %v1116
  %v1200 = vpop.f32.mrf.mxu0
  %v1201 = vadd.f32 0.0, %v1200
  %v1202 = vpop.f32.mrf.mxu0
  %v1203 = vadd.f32 0.0, %v1202
  %1204 = vmatmul.bf16.gmra.mxu0 %v1119
  %v1205 = vpop.f32.mrf.mxu0
  %v1206 = vadd.f32 0.0, %v1205
  %v1207 = vpop.f32.mrf.mxu0
  %v1208 = vadd.f32 0.0, %v1207
  %1209 = vmatmul.bf16.gmra.mxu0 %v1122
  %v1210 = vpop.f32.mrf.mxu0
  %v1211 = vadd.f32 0.0, %v1210
  %v1212 = vpop.f32.mrf.mxu0
  %v1213 = vadd.f32 0.0, %v1212
  %1214 = vmatmul.bf16.gmra.mxu0 %v1125
  %v1215 = vpop.f32.mrf.mxu0
  %v1216 = vadd.f32 0.0, %v1215
  %v1217 = vpop.f32.mrf.mxu0
  %v1218 = vadd.f32 0.0, %v1217
  %1219 = vmatmul.bf16.gmra.mxu0 %v1128
  %v1220 = vpop.f32.mrf.mxu0
  %v1221 = vadd.f32 0.0, %v1220
  %v1222 = vpop.f32.mrf.mxu0
  %v1223 = vadd.f32 0.0, %v1222
  %1224 = vmatmul.bf16.gmra.mxu0 %v1131
  %v1225 = vpop.f32.mrf.mxu0
  %v1226 = vadd.f32 0.0, %v1225
  %v1227 = vpop.f32.mrf.mxu0
  %v1228 = vadd.f32 0.0, %v1227
  %1229 = vmatmul.bf16.gmra.mxu0 %v1134
  %v1230 = vpop.f32.mrf.mxu0
  %v1231 = vadd.f32 0.0, %v1230
  %v1232 = vpop.f32.mrf.mxu0
  %v1233 = vadd.f32 0.0, %v1232
  %1234 = vdwg.mxu0
  %v1235 = vmax.f32 %v920, %v1146
  %v1236 = vmax.f32 %v921, %v1148
  %v1237 = vmax.f32 %v922, %v1151
  %v1238 = vmax.f32 %v923, %v1153
  %v1239 = vmax.f32 %v924, %v1156
  %v1240 = vmax.f32 %v925, %v1158
  %v1241 = vmax.f32 %v926, %v1161
  %v1242 = vmax.f32 %v927, %v1163
  %v1243 = vmax.f32 %v928, %v1166
  %v1244 = vmax.f32 %v929, %v1168
  %v1245 = vmax.f32 %v930, %v1171
  %v1246 = vmax.f32 %v931, %v1173
  %v1247 = vmax.f32 %v932, %v1176
  %v1248 = vmax.f32 %v933, %v1178
  %v1249 = vmax.f32 %v934, %v1181
  %v1250 = vmax.f32 %v935, %v1183
  %v1251 = vmax.f32 %v936, %v1186
  %v1252 = vmax.f32 %v937, %v1188
  %v1253 = vmax.f32 %v938, %v1191
  %v1254 = vmax.f32 %v939, %v1193
  %v1255 = vmax.f32 %v940, %v1196
  %v1256 = vmax.f32 %v941, %v1198
  %v1257 = vmax.f32 %v942, %v1201
  %v1258 = vmax.f32 %v943, %v1203
  %v1259 = vmax.f32 %v944, %v1206
  %v1260 = vmax.f32 %v945, %v1208
  %v1261 = vmax.f32 %v946, %v1211
  %v1262 = vmax.f32 %v947, %v1213
  %v1263 = vmax.f32 %v948, %v1216
  %v1264 = vmax.f32 %v949, %v1218
  %v1265 = vmax.f32 %v950, %v1221
  %v1266 = vmax.f32 %v951, %v1223
  %v1267 = vmax.f32 %v952, %v1226
  %v1268 = vmax.f32 %v953, %v1228
  %v1269 = vmax.f32 %v954, %v1231
  %v1270 = vmax.f32 %v955, %v1233
  %v1271 = vld [vmem:[%s5] sm:$0x1]
  %v1273 = vperm.slane %v1271, 0
  %v1275 = vadd.f32 %v1235, %v1273
  %v1276 = vadd.f32 %v1236, %v1273
  %v1277 = vadd.f32 %v1237, %v1273
  %v1278 = vadd.f32 %v1238, %v1273
  %v1279 = vadd.f32 %v1239, %v1273
  %v1280 = vadd.f32 %v1240, %v1273
  %v1281 = vadd.f32 %v1241, %v1273
  %v1282 = vadd.f32 %v1242, %v1273
  %v1283 = vadd.f32 %v1243, %v1273
  %v1284 = vadd.f32 %v1244, %v1273
  %v1285 = vadd.f32 %v1245, %v1273
  %v1286 = vadd.f32 %v1246, %v1273
  %v1287 = vadd.f32 %v1247, %v1273
  %v1288 = vadd.f32 %v1248, %v1273
  %v1289 = vadd.f32 %v1249, %v1273
  %v1290 = vadd.f32 %v1250, %v1273
  %v1291 = vadd.f32 %v1251, %v1273
  %v1292 = vadd.f32 %v1252, %v1273
  %v1293 = vadd.f32 %v1253, %v1273
  %v1294 = vadd.f32 %v1254, %v1273
  %v1295 = vadd.f32 %v1255, %v1273
  %v1296 = vadd.f32 %v1256, %v1273
  %v1297 = vadd.f32 %v1257, %v1273
  %v1298 = vadd.f32 %v1258, %v1273
  %v1299 = vadd.f32 %v1259, %v1273
  %v1300 = vadd.f32 %v1260, %v1273
  %v1301 = vadd.f32 %v1261, %v1273
  %v1302 = vadd.f32 %v1262, %v1273
  %v1303 = vadd.f32 %v1263, %v1273
  %v1304 = vadd.f32 %v1264, %v1273
  %v1305 = vadd.f32 %v1265, %v1273
  %v1306 = vadd.f32 %v1266, %v1273
  %v1307 = vadd.f32 %v1267, %v1273
  %v1308 = vadd.f32 %v1268, %v1273
  %v1309 = vadd.f32 %v1269, %v1273
  %v1310 = vadd.f32 %v1270, %v1273
  %v1311 = vmax.f32 %v1275, 0.0
  %v1312 = vmax.f32 %v1276, 0.0
  %v1313 = vmax.f32 %v1277, 0.0
  %v1314 = vmax.f32 %v1278, 0.0
  %v1315 = vmax.f32 %v1279, 0.0
  %v1316 = vmax.f32 %v1280, 0.0
  %v1317 = vmax.f32 %v1281, 0.0
  %v1318 = vmax.f32 %v1282, 0.0
  %v1319 = vmax.f32 %v1283, 0.0
  %v1320 = vmax.f32 %v1284, 0.0
  %v1321 = vmax.f32 %v1285, 0.0
  %v1322 = vmax.f32 %v1286, 0.0
  %v1323 = vmax.f32 %v1287, 0.0
  %v1324 = vmax.f32 %v1288, 0.0
  %v1325 = vmax.f32 %v1289, 0.0
  %v1326 = vmax.f32 %v1290, 0.0
  %v1327 = vmax.f32 %v1291, 0.0
  %v1328 = vmax.f32 %v1292, 0.0
  %v1329 = vmax.f32 %v1293, 0.0
  %v1330 = vmax.f32 %v1294, 0.0
  %v1331 = vmax.f32 %v1295, 0.0
  %v1332 = vmax.f32 %v1296, 0.0
  %v1333 = vmax.f32 %v1297, 0.0
  %v1334 = vmax.f32 %v1298, 0.0
  %v1335 = vmax.f32 %v1299, 0.0
  %v1336 = vmax.f32 %v1300, 0.0
  %v1337 = vmax.f32 %v1301, 0.0
  %v1338 = vmax.f32 %v1302, 0.0
  %v1339 = vmax.f32 %v1303, 0.0
  %v1340 = vmax.f32 %v1304, 0.0
  %v1341 = vmax.f32 %v1305, 0.0
  %v1342 = vmax.f32 %v1306, 0.0
  %v1343 = vmax.f32 %v1307, 0.0
  %v1344 = vmax.f32 %v1308, 0.0
  %v1345 = vmax.f32 %v1309, 0.0
  %v1346 = vmax.f32 %v1310, 0.0
  %v1347 = vpack.c.bf16 %v1311, %v1311
  %v1348 = vpack.c.bf16 %v1312, %v1312
  %v1349 = vpack.c.bf16 %v1313, %v1313
  %v1350 = vpack.c.bf16 %v1314, %v1314
  %v1351 = vpack.c.bf16 %v1315, %v1315
  %v1352 = vpack.c.bf16 %v1316, %v1316
  %v1353 = vpack.c.bf16 %v1317, %v1317
  %v1354 = vpack.c.bf16 %v1318, %v1318
  %v1355 = vpack.c.bf16 %v1319, %v1319
  %v1356 = vpack.c.bf16 %v1320, %v1320
  %v1357 = vpack.c.bf16 %v1321, %v1321
  %v1358 = vpack.c.bf16 %v1322, %v1322
  %v1359 = vpack.c.bf16 %v1323, %v1323
  %v1360 = vpack.c.bf16 %v1324, %v1324
  %v1361 = vpack.c.bf16 %v1325, %v1325
  %v1362 = vpack.c.bf16 %v1326, %v1326
  %v1363 = vpack.c.bf16 %v1327, %v1327
  %v1364 = vpack.c.bf16 %v1328, %v1328
  %v1365 = vpack.c.bf16 %v1329, %v1329
  %v1366 = vpack.c.bf16 %v1330, %v1330
  %v1367 = vpack.c.bf16 %v1331, %v1331
  %v1368 = vpack.c.bf16 %v1332, %v1332
  %v1369 = vpack.c.bf16 %v1333, %v1333
  %v1370 = vpack.c.bf16 %v1334, %v1334
  %v1371 = vpack.c.bf16 %v1335, %v1335
  %v1372 = vpack.c.bf16 %v1336, %v1336
  %v1373 = vpack.c.bf16 %v1337, %v1337
  %v1374 = vpack.c.bf16 %v1338, %v1338
  %v1375 = vpack.c.bf16 %v1339, %v1339
  %v1376 = vpack.c.bf16 %v1340, %v1340
  %v1377 = vpack.c.bf16 %v1341, %v1341
  %v1378 = vpack.c.bf16 %v1342, %v1342
  %v1379 = vpack.c.bf16 %v1343, %v1343
  %v1380 = vpack.c.bf16 %v1344, %v1344
  %v1381 = vpack.c.bf16 %v1345, %v1345
  %v1382 = vpack.c.bf16 %v1346, %v1346
  %1383 = vst [vmem:[%s6] sm:$0xf] %v1347
  %1384 = vst [vmem:[%s6 + $0x4] sm:$0xf] %v1348
  %1385 = vst [vmem:[%s6 + $0x8] sm:$0xf] %v1349
  %1386 = vst [vmem:[%s6 + $0xc] sm:$0xf] %v1350
  %1387 = vst [vmem:[%s6 + $0x10] sm:$0xf] %v1351
  %1388 = vst [vmem:[%s6 + $0x14] sm:$0xf] %v1352
  %1389 = vst [vmem:[%s6 + $0x18] sm:$0xf] %v1353
  %1390 = vst [vmem:[%s6 + $0x1c] sm:$0xf] %v1354
  %1391 = vst [vmem:[%s6 + $0x20] sm:$0xf] %v1355
  %1392 = vst [vmem:[%s6 + $0x24] sm:$0xf] %v1356
  %1393 = vst [vmem:[%s6 + $0x28] sm:$0xf] %v1357
  %1394 = vst [vmem:[%s6 + $0x2c] sm:$0xf] %v1358
  %1395 = vst [vmem:[%s6 + $0x30] sm:$0xf] %v1359
  %1396 = vst [vmem:[%s6 + $0x34] sm:$0xf] %v1360
  %1397 = vst [vmem:[%s6 + $0x38] sm:$0xf] %v1361
  %1398 = vst [vmem:[%s6 + $0x3c] sm:$0xf] %v1362
  %1399 = vst [vmem:[%s6 + $0x40] sm:$0xf] %v1363
  %1400 = vst [vmem:[%s6 + $0x44] sm:$0xf] %v1364
  %1401 = vst [vmem:[%s6 + $0x48] sm:$0xf] %v1365
  %1402 = vst [vmem:[%s6 + $0x4c] sm:$0xf] %v1366
  %1403 = vst [vmem:[%s6 + $0x50] sm:$0xf] %v1367
  %1404 = vst [vmem:[%s6 + $0x54] sm:$0xf] %v1368
  %1405 = vst [vmem:[%s6 + $0x58] sm:$0xf] %v1369
  %1406 = vst [vmem:[%s6 + $0x5c] sm:$0xf] %v1370
  %1407 = vst [vmem:[%s6 + $0x60] sm:$0xf] %v1371
  %1408 = vst [vmem:[%s6 + $0x64] sm:$0xf] %v1372
  %1409 = vst [vmem:[%s6 + $0x68] sm:$0xf] %v1373
  %1410 = vst [vmem:[%s6 + $0x6c] sm:$0xf] %v1374
  %1411 = vst [vmem:[%s6 + $0x70] sm:$0xf] %v1375
  %1412 = vst [vmem:[%s6 + $0x74] sm:$0xf] %v1376
  %1413 = vst [vmem:[%s6 + $0x78] sm:$0xf] %v1377
  %1414 = vst [vmem:[%s6 + $0x7c] sm:$0xf] %v1378
  %1415 = vst [vmem:[%s6 + $0x80] sm:$0xf] %v1379
  %1416 = vst [vmem:[%s6 + $0x84] sm:$0xf] %v1380
  %1417 = vst [vmem:[%s6 + $0x88] sm:$0xf] %v1381
  %1418 = vst [vmem:[%s6 + $0x8c] sm:$0xf] %v1382
  // Predicated region
  $region26: #{forward.3} parent=0 // pred_check
    _
  $region27: #{forward.3} parent=0 // pred_check_branch
    %1420 = sbr.rel (0) target = $region29
  $region28: #{forward.3} parent=0 // pred_region
    _
  $region29: #{forward.3} parent=0 // pred_fallthru
    _
  // Predicated region
  $region30: #{forward.3} parent=0 // pred_check
    _
  $region31: #{forward.3} parent=0 // pred_check_branch
    %1422 = sbr.rel (0) target = $region33
  $region32: #{forward.3} parent=0 // pred_region
    _
  $region33: #{forward.3} parent=0 // pred_fallthru
    _

// kernel: forward.4
$region0: #{forward.4}
  #allocation0 [shape = 'u32[]', space=smem, size = 0x4, offset = 0x4, fixed_abs, tag = 'smem constant byte address 0x4 - core index']
  #allocation1 [shape = 'u32[72,128]{1,0:T(1,128)}', space=vmem, size = 0x9000, scoped, tag = 'internal scratch']
  %s0 = inlined_call_operand.vmem [shape: bf16[32,150], index: 0, kind: input, shape index: {}]
  %s1 = inlined_call_operand.vmem [shape: bf16[32,150], index: 1, kind: input, shape index: {}]
  %s2 = inlined_call_operand.vmem [shape: bf16[32,150], index: 2, kind: input, shape index: {}]
  %s3 = inlined_call_operand.vmem [shape: bf16[32,150], index: 3, kind: input, shape index: {}]
  %s4 = inlined_call_operand.vmem [shape: bf16[150,128], index: 4, kind: input, shape index: {}]
  %s5 = inlined_call_operand.vmem [shape: f32[1,128], index: 5, kind: input, shape index: {}]
  %s6 = inlined_call_operand.vmem [shape: bf16[32,128], index: 6, kind: output, shape index: {}]
  %s7 = sld [smem:[#allocation0]]
  $region34: #{forward.4} parent=0
    _
  %s9 = ssub.s32 1, %s7
  %s10 = scalar_select 0, %s9, %s7
  // Predicated region
  $region2: #{forward.4} parent=0 // pred_check
    _
  $region3: #{forward.4} parent=0 // pred_check_branch
    %12 = sbr.rel (0) target = $region5
  $region4: #{forward.4} parent=0 // pred_region
    _
  $region5: #{forward.4} parent=0 // pred_fallthru
    _
  // Predicated region
  $region6: #{forward.4} parent=0 // pred_check
    _
  $region7: #{forward.4} parent=0 // pred_check_branch
    %14 = sbr.rel (0) target = $region9
  $region8: #{forward.4} parent=0 // pred_region
    _
  $region9: #{forward.4} parent=0 // pred_fallthru
    _
  // Predicated region
  $region10: #{forward.4} parent=0 // pred_check
    _
  $region11: #{forward.4} parent=0 // pred_check_branch
    %16 = sbr.rel (0) target = $region13
  $region12: #{forward.4} parent=0 // pred_region
    _
  $region13: #{forward.4} parent=0 // pred_fallthru
    _
  // Predicated region
  $region14: #{forward.4} parent=0 // pred_check
    _
  $region15: #{forward.4} parent=0 // pred_check_branch
    %18 = sbr.rel (0) target = $region17
  $region16: #{forward.4} parent=0 // pred_region
    _
  $region17: #{forward.4} parent=0 // pred_fallthru
    _
  // Predicated region
  $region18: #{forward.4} parent=0 // pred_check
    _
  $region19: #{forward.4} parent=0 // pred_check_branch
    %20 = sbr.rel (0) target = $region21
  $region20: #{forward.4} parent=0 // pred_region
    _
  $region21: #{forward.4} parent=0 // pred_fallthru
    _
  // Predicated region
  $region22: #{forward.4} parent=0 // pred_check
    _
  $region23: #{forward.4} parent=0 // pred_check_branch
    %22 = sbr.rel (0) target = $region25
  $region24: #{forward.4} parent=0 // pred_region
    _
  $region25: #{forward.4} parent=0 // pred_fallthru
    _
  %v24 = vld [vmem:[%s4] sm:$0xf]
  %v25 = vld [vmem:[%s4 + $0x4] sm:$0xf]
  %v26 = vld [vmem:[%s4 + $0x8] sm:$0xf]
  %v27 = vld [vmem:[%s4 + $0xc] sm:$0xf]
  %v28 = vld [vmem:[%s4 + $0x10] sm:$0xf]
  %v29 = vld [vmem:[%s4 + $0x14] sm:$0xf]
  %v30 = vld [vmem:[%s4 + $0x18] sm:$0xf]
  %v31 = vld [vmem:[%s4 + $0x1c] sm:$0xf]
  %v32 = vld [vmem:[%s4 + $0x20] sm:$0xf]
  %v33 = vld [vmem:[%s4 + $0x24] sm:$0xf]
  %v34 = vld [vmem:[%s4 + $0x28] sm:$0xf]
  %v35 = vld [vmem:[%s4 + $0x2c] sm:$0xf]
  %v36 = vld [vmem:[%s4 + $0x30] sm:$0xf]
  %v37 = vld [vmem:[%s4 + $0x34] sm:$0xf]
  %v38 = vld [vmem:[%s4 + $0x38] sm:$0xf]
  %v39 = vld [vmem:[%s4 + $0x3c] sm:$0xf]
  %v40 = vld [vmem:[%s4 + $0x40] sm:$0xf]
  %v41 = vld [vmem:[%s4 + $0x44] sm:$0xf]
  %v42 = vld [vmem:[%s4 + $0x48] sm:$0x7]
  %v43 = vld [vmem:[%s0] sm:$0xff]
  %v44 = vld [vmem:[%s0 + $0x8] sm:$0xff]
  %v45 = vld [vmem:[%s0 + $0x10] sm:$0xff]
  %v46 = vld [vmem:[%s0 + $0x18] sm:$0xff]
  %v51 = vunpack.c.l.b16 %v43
  %v52 = vunpack.c.h.b16 %v43
  %v53 = vunpack.c.l.b16 %v44
  %v54 = vunpack.c.h.b16 %v44
  %v55 = vunpack.c.l.b16 %v45
  %v56 = vunpack.c.h.b16 %v45
  %v57 = vunpack.c.l.b16 %v46
  %v58 = vunpack.c.h.b16 %v46
  %v59 = vpack.c.b16 %v53, %v51
  %v60 = vpack.c.b16 %v54, %v52
  %v61 = vpack.c.b16 %v57, %v55
  %v62 = vpack.c.b16 %v58, %v56
  %v84 = vunpack.c.l.b16 %v24
  %v85 = vunpack.c.l.b16 %v25
  %v86 = vunpack.c.l.b16 %v26
  %v87 = vunpack.c.l.b16 %v27
  %v88 = vunpack.c.l.b16 %v28
  %v89 = vunpack.c.l.b16 %v29
  %v90 = vunpack.c.l.b16 %v30
  %v91 = vunpack.c.l.b16 %v31
  %v92 = vunpack.c.l.b16 %v32
  %v93 = vunpack.c.l.b16 %v33
  %v94 = vunpack.c.l.b16 %v34
  %v95 = vunpack.c.l.b16 %v35
  %v96 = vunpack.c.l.b16 %v36
  %v97 = vunpack.c.l.b16 %v37
  %v98 = vunpack.c.l.b16 %v38
  %v99 = vunpack.c.l.b16 %v39
  %v100 = vunpack.c.l.b16 %v40
  %v101 = vunpack.c.l.b16 %v41
  %v102 = vunpack.c.l.b16 %v42
  %v103 = vpack.c.b16 %v85, %v84
  %v104 = vpack.c.b16 %v87, %v86
  %v105 = vpack.c.b16 %v89, %v88
  %v106 = vpack.c.b16 %v91, %v90
  %v107 = vpack.c.b16 %v93, %v92
  %v108 = vpack.c.b16 %v95, %v94
  %v109 = vpack.c.b16 %v97, %v96
  %v110 = vpack.c.b16 %v99, %v98
  %v111 = vpack.c.b16 %v101, %v100
  %v112 = vpack.c.b16 %v102, %v102
  %vm122 = vcmask 179200
  %v124 = vsel %vm122, %v60, 0
  %v127 = vsel %vm122, %v62, 0
  %vm129 = vcmask 1042432
  %v131 = vsel %vm129, %v112, 0
  %133 = vmatpush.bf16.msra.mxu0 %v110
  %134 = vmatpush.bf16.msra.mxu0 %v109
  %135 = vmatpush.bf16.msra.mxu0 %v108
  %136 = vmatpush.bf16.msra.mxu0 %v107
  %137 = vmatpush.bf16.msra.mxu0 %v106
  %138 = vmatpush.bf16.msra.mxu0 %v105
  %139 = vmatpush.bf16.msra.mxu0 %v104
  %140 = vmatpush.bf16.msra.mxu0 %v103
  %141 = vmatmul.bf16.gmra.mxu0 %v59
  %v142 = vpop.f32.mrf.mxu0
  %v143 = vadd.f32 0.0, %v142
  %v144 = vpop.f32.mrf.mxu0
  %v145 = vadd.f32 0.0, %v144
  %146 = vmatmul.bf16.gmra.mxu0 %v61
  %v147 = vpop.f32.mrf.mxu0
  %v148 = vadd.f32 0.0, %v147
  %v149 = vpop.f32.mrf.mxu0
  %v150 = vadd.f32 0.0, %v149
  %151 = vdwg.mxu0
  %152 = vmatpush.bf16.msra.mxu0 0
  %153 = vmatpush.bf16.msra.mxu0 0
  %154 = vmatpush.bf16.msra.mxu0 0
  %155 = vmatpush.bf16.msra.mxu0 0
  %156 = vmatpush.bf16.msra.mxu0 0
  %157 = vmatpush.bf16.msra.mxu0 0
  %158 = vmatpush.bf16.msra.mxu0 %v131
  %159 = vmatpush.bf16.msra.mxu0 %v111
  %160 = vmatmul.bf16.gmra.mxu0 %v124
  %v161 = vpop.f32.mrf.mxu0
  %v162 = vadd.f32 %v143, %v161
  %v163 = vpop.f32.mrf.mxu0
  %v164 = vadd.f32 %v145, %v163
  %165 = vmatmul.bf16.gmra.mxu0 %v127
  %v166 = vpop.f32.mrf.mxu0
  %v167 = vadd.f32 %v148, %v166
  %v168 = vpop.f32.mrf.mxu0
  %v169 = vadd.f32 %v150, %v168
  %170 = vdwg.mxu0
  %v171 = vld [vmem:[%s1] sm:$0xff]
  %v172 = vld [vmem:[%s1 + $0x8] sm:$0xff]
  %v173 = vld [vmem:[%s1 + $0x10] sm:$0xff]
  %v174 = vld [vmem:[%s1 + $0x18] sm:$0xff]
  %v179 = vunpack.c.l.b16 %v171
  %v180 = vunpack.c.h.b16 %v171
  %v181 = vunpack.c.l.b16 %v172
  %v182 = vunpack.c.h.b16 %v172
  %v183 = vunpack.c.l.b16 %v173
  %v184 = vunpack.c.h.b16 %v173
  %v185 = vunpack.c.l.b16 %v174
  %v186 = vunpack.c.h.b16 %v174
  %v187 = vpack.c.b16 %v181, %v179
  %v188 = vpack.c.b16 %v182, %v180
  %v189 = vpack.c.b16 %v185, %v183
  %v190 = vpack.c.b16 %v186, %v184
  %v194 = vsel %vm122, %v188, 0
  %v197 = vsel %vm122, %v190, 0
  %199 = vmatpush.bf16.msra.mxu0 %v110
  %200 = vmatpush.bf16.msra.mxu0 %v109
  %201 = vmatpush.bf16.msra.mxu0 %v108
  %202 = vmatpush.bf16.msra.mxu0 %v107
  %203 = vmatpush.bf16.msra.mxu0 %v106
  %204 = vmatpush.bf16.msra.mxu0 %v105
  %205 = vmatpush.bf16.msra.mxu0 %v104
  %206 = vmatpush.bf16.msra.mxu0 %v103
  %207 = vmatmul.bf16.gmra.mxu0 %v187
  %v208 = vpop.f32.mrf.mxu0
  %v209 = vadd.f32 0.0, %v208
  %v210 = vpop.f32.mrf.mxu0
  %v211 = vadd.f32 0.0, %v210
  %212 = vmatmul.bf16.gmra.mxu0 %v189
  %v213 = vpop.f32.mrf.mxu0
  %v214 = vadd.f32 0.0, %v213
  %v215 = vpop.f32.mrf.mxu0
  %v216 = vadd.f32 0.0, %v215
  %217 = vdwg.mxu0
  %218 = vmatpush.bf16.msra.mxu0 0
  %219 = vmatpush.bf16.msra.mxu0 0
  %220 = vmatpush.bf16.msra.mxu0 0
  %221 = vmatpush.bf16.msra.mxu0 0
  %222 = vmatpush.bf16.msra.mxu0 0
  %223 = vmatpush.bf16.msra.mxu0 0
  %224 = vmatpush.bf16.msra.mxu0 %v131
  %225 = vmatpush.bf16.msra.mxu0 %v111
  %226 = vmatmul.bf16.gmra.mxu0 %v194
  %v227 = vpop.f32.mrf.mxu0
  %v228 = vadd.f32 %v209, %v227
  %v229 = vpop.f32.mrf.mxu0
  %v230 = vadd.f32 %v211, %v229
  %231 = vmatmul.bf16.gmra.mxu0 %v197
  %v232 = vpop.f32.mrf.mxu0
  %v233 = vadd.f32 %v214, %v232
  %v234 = vpop.f32.mrf.mxu0
  %v235 = vadd.f32 %v216, %v234
  %236 = vdwg.mxu0
  %v237 = vmax.f32 %v162, %v228
  %v238 = vmax.f32 %v164, %v230
  %v239 = vmax.f32 %v167, %v233
  %v240 = vmax.f32 %v169, %v235
  %v241 = vld [vmem:[%s2] sm:$0xff]
  %v242 = vld [vmem:[%s2 + $0x8] sm:$0xff]
  %v243 = vld [vmem:[%s2 + $0x10] sm:$0xff]
  %v244 = vld [vmem:[%s2 + $0x18] sm:$0xff]
  %v249 = vunpack.c.l.b16 %v241
  %v250 = vunpack.c.h.b16 %v241
  %v251 = vunpack.c.l.b16 %v242
  %v252 = vunpack.c.h.b16 %v242
  %v253 = vunpack.c.l.b16 %v243
  %v254 = vunpack.c.h.b16 %v243
  %v255 = vunpack.c.l.b16 %v244
  %v256 = vunpack.c.h.b16 %v244
  %v257 = vpack.c.b16 %v251, %v249
  %v258 = vpack.c.b16 %v252, %v250
  %v259 = vpack.c.b16 %v255, %v253
  %v260 = vpack.c.b16 %v256, %v254
  %v264 = vsel %vm122, %v258, 0
  %v267 = vsel %vm122, %v260, 0
  %269 = vmatpush.bf16.msra.mxu0 %v110
  %270 = vmatpush.bf16.msra.mxu0 %v109
  %271 = vmatpush.bf16.msra.mxu0 %v108
  %272 = vmatpush.bf16.msra.mxu0 %v107
  %273 = vmatpush.bf16.msra.mxu0 %v106
  %274 = vmatpush.bf16.msra.mxu0 %v105
  %275 = vmatpush.bf16.msra.mxu0 %v104
  %276 = vmatpush.bf16.msra.mxu0 %v103
  %277 = vmatmul.bf16.gmra.mxu0 %v257
  %v278 = vpop.f32.mrf.mxu0
  %v279 = vadd.f32 0.0, %v278
  %v280 = vpop.f32.mrf.mxu0
  %v281 = vadd.f32 0.0, %v280
  %282 = vmatmul.bf16.gmra.mxu0 %v259
  %v283 = vpop.f32.mrf.mxu0
  %v284 = vadd.f32 0.0, %v283
  %v285 = vpop.f32.mrf.mxu0
  %v286 = vadd.f32 0.0, %v285
  %287 = vdwg.mxu0
  %288 = vmatpush.bf16.msra.mxu0 0
  %289 = vmatpush.bf16.msra.mxu0 0
  %290 = vmatpush.bf16.msra.mxu0 0
  %291 = vmatpush.bf16.msra.mxu0 0
  %292 = vmatpush.bf16.msra.mxu0 0
  %293 = vmatpush.bf16.msra.mxu0 0
  %294 = vmatpush.bf16.msra.mxu0 %v131
  %295 = vmatpush.bf16.msra.mxu0 %v111
  %296 = vmatmul.bf16.gmra.mxu0 %v264
  %v297 = vpop.f32.mrf.mxu0
  %v298 = vadd.f32 %v279, %v297
  %v299 = vpop.f32.mrf.mxu0
  %v300 = vadd.f32 %v281, %v299
  %301 = vmatmul.bf16.gmra.mxu0 %v267
  %v302 = vpop.f32.mrf.mxu0
  %v303 = vadd.f32 %v284, %v302
  %v304 = vpop.f32.mrf.mxu0
  %v305 = vadd.f32 %v286, %v304
  %306 = vdwg.mxu0
  %v307 = vmax.f32 %v237, %v298
  %v308 = vmax.f32 %v238, %v300
  %v309 = vmax.f32 %v239, %v303
  %v310 = vmax.f32 %v240, %v305
  %v311 = vld [vmem:[%s3] sm:$0xff]
  %v312 = vld [vmem:[%s3 + $0x8] sm:$0xff]
  %v313 = vld [vmem:[%s3 + $0x10] sm:$0xff]
  %v314 = vld [vmem:[%s3 + $0x18] sm:$0xff]
  %v319 = vunpack.c.l.b16 %v311
  %v320 = vunpack.c.h.b16 %v311
  %v321 = vunpack.c.l.b16 %v312
  %v322 = vunpack.c.h.b16 %v312
  %v323 = vunpack.c.l.b16 %v313
  %v324 = vunpack.c.h.b16 %v313
  %v325 = vunpack.c.l.b16 %v314
  %v326 = vunpack.c.h.b16 %v314
  %v327 = vpack.c.b16 %v321, %v319
  %v328 = vpack.c.b16 %v322, %v320
  %v329 = vpack.c.b16 %v325, %v323
  %v330 = vpack.c.b16 %v326, %v324
  %v334 = vsel %vm122, %v328, 0
  %v337 = vsel %vm122, %v330, 0
  %339 = vmatpush.bf16.msra.mxu0 %v110
  %340 = vmatpush.bf16.msra.mxu0 %v109
  %341 = vmatpush.bf16.msra.mxu0 %v108
  %342 = vmatpush.bf16.msra.mxu0 %v107
  %343 = vmatpush.bf16.msra.mxu0 %v106
  %344 = vmatpush.bf16.msra.mxu0 %v105
  %345 = vmatpush.bf16.msra.mxu0 %v104
  %346 = vmatpush.bf16.msra.mxu0 %v103
  %347 = vmatmul.bf16.gmra.mxu0 %v327
  %v348 = vpop.f32.mrf.mxu0
  %v349 = vadd.f32 0.0, %v348
  %v350 = vpop.f32.mrf.mxu0
  %v351 = vadd.f32 0.0, %v350
  %352 = vmatmul.bf16.gmra.mxu0 %v329
  %v353 = vpop.f32.mrf.mxu0
  %v354 = vadd.f32 0.0, %v353
  %v355 = vpop.f32.mrf.mxu0
  %v356 = vadd.f32 0.0, %v355
  %357 = vdwg.mxu0
  %358 = vmatpush.bf16.msra.mxu0 0
  %359 = vmatpush.bf16.msra.mxu0 0
  %360 = vmatpush.bf16.msra.mxu0 0
  %361 = vmatpush.bf16.msra.mxu0 0
  %362 = vmatpush.bf16.msra.mxu0 0
  %363 = vmatpush.bf16.msra.mxu0 0
  %364 = vmatpush.bf16.msra.mxu0 %v131
  %365 = vmatpush.bf16.msra.mxu0 %v111
  %366 = vmatmul.bf16.gmra.mxu0 %v334
  %v367 = vpop.f32.mrf.mxu0
  %v368 = vadd.f32 %v349, %v367
  %v369 = vpop.f32.mrf.mxu0
  %v370 = vadd.f32 %v351, %v369
  %371 = vmatmul.bf16.gmra.mxu0 %v337
  %v372 = vpop.f32.mrf.mxu0
  %v373 = vadd.f32 %v354, %v372
  %v374 = vpop.f32.mrf.mxu0
  %v375 = vadd.f32 %v356, %v374
  %376 = vdwg.mxu0
  %v377 = vmax.f32 %v307, %v368
  %v378 = vmax.f32 %v308, %v370
  %v379 = vmax.f32 %v309, %v373
  %v380 = vmax.f32 %v310, %v375
  %v381 = vld [vmem:[%s5] sm:$0x1]
  %v383 = vperm.slane %v381, 0
  %v385 = vadd.f32 %v377, %v383
  %v386 = vadd.f32 %v378, %v383
  %v387 = vadd.f32 %v379, %v383
  %v388 = vadd.f32 %v380, %v383
  %v389 = vmax.f32 %v385, 0.0
  %v390 = vmax.f32 %v386, 0.0
  %v391 = vmax.f32 %v387, 0.0
  %v392 = vmax.f32 %v388, 0.0
  %v393 = vpack.c.bf16 %v389, %v389
  %v394 = vpack.c.bf16 %v390, %v390
  %v395 = vpack.c.bf16 %v391, %v391
  %v396 = vpack.c.bf16 %v392, %v392
  %397 = vst [vmem:[%s6] sm:$0xf] %v393
  %398 = vst [vmem:[%s6 + $0x4] sm:$0xf] %v394
  %399 = vst [vmem:[%s6 + $0x8] sm:$0xf] %v395
  %400 = vst [vmem:[%s6 + $0xc] sm:$0xf] %v396
  // Predicated region
  $region26: #{forward.4} parent=0 // pred_check
    _
  $region27: #{forward.4} parent=0 // pred_check_branch
    %402 = sbr.rel (0) target = $region29
  $region28: #{forward.4} parent=0 // pred_region
    _
  $region29: #{forward.4} parent=0 // pred_fallthru
    _
  // Predicated region
  $region30: #{forward.4} parent=0 // pred_check
    _
  $region31: #{forward.4} parent=0 // pred_check_branch
    %404 = sbr.rel (0) target = $region33
  $region32: #{forward.4} parent=0 // pred_region
    _
  $region33: #{forward.4} parent=0 // pred_fallthru
    _

// kernel: forward.5
$region0: #{forward.5}
  #allocation0 [shape = 'u32[]', space=smem, size = 0x4, offset = 0x4, fixed_abs, tag = 'smem constant byte address 0x4 - core index']
  #allocation1 [shape = 'u32[72,128]{1,0:T(1,128)}', space=vmem, size = 0x9000, scoped, tag = 'internal scratch']
  %s0 = inlined_call_operand.vmem [shape: bf16[16,192], index: 0, kind: input, shape index: {}]
  %s1 = inlined_call_operand.vmem [shape: bf16[192,128], index: 1, kind: input, shape index: {}]
  %s2 = inlined_call_operand.vmem [shape: f32[1,128], index: 2, kind: input, shape index: {}]
  %s3 = inlined_call_operand.vmem [shape: f32[16,128], index: 3, kind: output, shape index: {}]
  %s4 = sld [smem:[#allocation0]]
  $region22: #{forward.5} parent=0
    _
  %s6 = ssub.s32 1, %s4
  %s7 = scalar_select 0, %s6, %s4
  // Predicated region
  $region2: #{forward.5} parent=0 // pred_check
    _
  $region3: #{forward.5} parent=0 // pred_check_branch
    %9 = sbr.rel (0) target = $region5
  $region4: #{forward.5} parent=0 // pred_region
    _
  $region5: #{forward.5} parent=0 // pred_fallthru
    _
  // Predicated region
  $region6: #{forward.5} parent=0 // pred_check
    _
  $region7: #{forward.5} parent=0 // pred_check_branch
    %11 = sbr.rel (0) target = $region9
  $region8: #{forward.5} parent=0 // pred_region
    _
  $region9: #{forward.5} parent=0 // pred_fallthru
    _
  // Predicated region
  $region10: #{forward.5} parent=0 // pred_check
    _
  $region11: #{forward.5} parent=0 // pred_check_branch
    %13 = sbr.rel (0) target = $region13
  $region12: #{forward.5} parent=0 // pred_region
    _
  $region13: #{forward.5} parent=0 // pred_fallthru
    _
  %v15 = vld [vmem:[%s0] sm:$0xff]
  %v16 = vld [vmem:[%s0 + $0x8] sm:$0xff]
  %v17 = vld [vmem:[%s1] sm:$0xf]
  %v18 = vld [vmem:[%s1 + $0x4] sm:$0xf]
  %v19 = vld [vmem:[%s1 + $0x8] sm:$0xf]
  %v20 = vld [vmem:[%s1 + $0xc] sm:$0xf]
  %v21 = vld [vmem:[%s1 + $0x10] sm:$0xf]
  %v22 = vld [vmem:[%s1 + $0x14] sm:$0xf]
  %v23 = vld [vmem:[%s1 + $0x18] sm:$0xf]
  %v24 = vld [vmem:[%s1 + $0x1c] sm:$0xf]
  %v25 = vld [vmem:[%s1 + $0x20] sm:$0xf]
  %v26 = vld [vmem:[%s1 + $0x24] sm:$0xf]
  %v27 = vld [vmem:[%s1 + $0x28] sm:$0xf]
  %v28 = vld [vmem:[%s1 + $0x2c] sm:$0xf]
  %v29 = vld [vmem:[%s1 + $0x30] sm:$0xf]
  %v30 = vld [vmem:[%s1 + $0x34] sm:$0xf]
  %v31 = vld [vmem:[%s1 + $0x38] sm:$0xf]
  %v32 = vld [vmem:[%s1 + $0x3c] sm:$0xf]
  %v33 = vld [vmem:[%s1 + $0x40] sm:$0xf]
  %v34 = vld [vmem:[%s1 + $0x44] sm:$0xf]
  %v35 = vld [vmem:[%s1 + $0x48] sm:$0xf]
  %v36 = vld [vmem:[%s1 + $0x4c] sm:$0xf]
  %v37 = vld [vmem:[%s1 + $0x50] sm:$0xf]
  %v38 = vld [vmem:[%s1 + $0x54] sm:$0xf]
  %v39 = vld [vmem:[%s1 + $0x58] sm:$0xf]
  %v40 = vld [vmem:[%s1 + $0x5c] sm:$0xf]
  %v41 = vld [vmem:[%s2] sm:$0x1]
  %v43 = vperm.slane %v41, 0
  %v47 = vunpack.c.l.b16 %v15
  %v48 = vunpack.c.h.b16 %v15
  %v49 = vunpack.c.l.b16 %v16
  %v50 = vunpack.c.h.b16 %v16
  %v51 = vpack.c.b16 %v49, %v47
  %v52 = vpack.c.b16 %v50, %v48
  %v78 = vunpack.c.l.b16 %v17
  %v79 = vunpack.c.l.b16 %v18
  %v80 = vunpack.c.l.b16 %v19
  %v81 = vunpack.c.l.b16 %v20
  %v82 = vunpack.c.l.b16 %v21
  %v83 = vunpack.c.l.b16 %v22
  %v84 = vunpack.c.l.b16 %v23
  %v85 = vunpack.c.l.b16 %v24
  %v86 = vunpack.c.l.b16 %v25
  %v87 = vunpack.c.l.b16 %v26
  %v88 = vunpack.c.l.b16 %v27
  %v89 = vunpack.c.l.b16 %v28
  %v90 = vunpack.c.l.b16 %v29
  %v91 = vunpack.c.l.b16 %v30
  %v92 = vunpack.c.l.b16 %v31
  %v93 = vunpack.c.l.b16 %v32
  %v94 = vunpack.c.l.b16 %v33
  %v95 = vunpack.c.l.b16 %v34
  %v96 = vunpack.c.l.b16 %v35
  %v97 = vunpack.c.l.b16 %v36
  %v98 = vunpack.c.l.b16 %v37
  %v99 = vunpack.c.l.b16 %v38
  %v100 = vunpack.c.l.b16 %v39
  %v101 = vunpack.c.l.b16 %v40
  %v102 = vpack.c.b16 %v79, %v78
  %v103 = vpack.c.b16 %v81, %v80
  %v104 = vpack.c.b16 %v83, %v82
  %v105 = vpack.c.b16 %v85, %v84
  %v106 = vpack.c.b16 %v87, %v86
  %v107 = vpack.c.b16 %v89, %v88
  %v108 = vpack.c.b16 %v91, %v90
  %v109 = vpack.c.b16 %v93, %v92
  %v110 = vpack.c.b16 %v95, %v94
  %v111 = vpack.c.b16 %v97, %v96
  %v112 = vpack.c.b16 %v99, %v98
  %v113 = vpack.c.b16 %v101, %v100
  %vm126 = vcmask 523264
  %v128 = vsel %vm126, %v52, 0
  %130 = vmatpush.bf16.msra.mxu0 %v109
  %131 = vmatpush.bf16.msra.mxu0 %v108
  %132 = vmatpush.bf16.msra.mxu0 %v107
  %133 = vmatpush.bf16.msra.mxu0 %v106
  %134 = vmatpush.bf16.msra.mxu0 %v105
  %135 = vmatpush.bf16.msra.mxu0 %v104
  %136 = vmatpush.bf16.msra.mxu0 %v103
  %137 = vmatpush.bf16.msra.mxu0 %v102
  %138 = vmatmul.bf16.gmra.mxu0 %v51
  %v139 = vpop.f32.mrf.mxu0
  %v140 = vadd.f32 %v43, %v139
  %v141 = vpop.f32.mrf.mxu0
  %v142 = vadd.f32 %v43, %v141
  %143 = vdwg.mxu0
  %144 = vmatpush.bf16.msra.mxu0 0
  %145 = vmatpush.bf16.msra.mxu0 0
  %146 = vmatpush.bf16.msra.mxu0 0
  %147 = vmatpush.bf16.msra.mxu0 0
  %148 = vmatpush.bf16.msra.mxu0 %v113
  %149 = vmatpush.bf16.msra.mxu0 %v112
  %150 = vmatpush.bf16.msra.mxu0 %v111
  %151 = vmatpush.bf16.msra.mxu0 %v110
  %152 = vmatmul.bf16.gmra.mxu0 %v128
  %v153 = vpop.f32.mrf.mxu0
  %v154 = vadd.f32 %v140, %v153
  %v155 = vpop.f32.mrf.mxu0
  %v156 = vadd.f32 %v142, %v155
  %157 = vdwg.mxu0
  %158 = vst [vmem:[%s3] sm:$0xff] %v154
  %159 = vst [vmem:[%s3 + $0x8] sm:$0xff] %v156
  // Predicated region
  $region14: #{forward.5} parent=0 // pred_check
    _
  $region15: #{forward.5} parent=0 // pred_check_branch
    %161 = sbr.rel (0) target = $region17
  $region16: #{forward.5} parent=0 // pred_region
    _
  $region17: #{forward.5} parent=0 // pred_fallthru
    _
  // Predicated region
  $region18: #{forward.5} parent=0 // pred_check
    _
  $region19: #{forward.5} parent=0 // pred_check_branch
    %163 = sbr.rel (0) target = $region21
  $region20: #{forward.5} parent=0 // pred_region
    _
  $region21: #{forward.5} parent=0 // pred_fallthru
    _

</llo_original>
